<compile_context>
chip_gen: v6e
topology: v6e:2x2x1
jax: 0.10.0
libtpu: 0.0.40
codegen_flags: <defaults>
</compile_context>

<pallas_src>
import jax
import jax.numpy as jnp
from jax import lax
from jax.experimental import pallas as pl
from jax.experimental.pallas import tpu as pltpu

# Small, forward-consistent shapes.
B = 2                       # user-visible batch
BP = 8                      # batch padded to the f32 sublane count
T = 8                       # sequence length (static -> fully unrolled)
H = 32                      # LSTM hidden size
C_IN = 2                    # audio channel + conditioning channel (cond=True path)
C_OUT = 1                   # model output channels
G = 4 * H                   # LSTM gate width (i, f, g, o) -> 128 lanes


def amp_lstm_kernel(x_ref, wih_ref, whh_ref, b_ref, wlin_ref, blin_ref, out_ref):
    """x_ref: (T, BP) audio, time-major.  out_ref: (T, BP).  Params f32 in VMEM.

    wih_ref : (1, G)   audio row of W_ih^T
    whh_ref : (H, G)   W_hh^T
    b_ref   : (1, G)   b_ih + b_hh + cond * W_ih^T[cond_row]   (folded in wrapper)
    wlin_ref: (1, H)   linear.weight
    blin_ref: (1, 1)   linear.bias
    """
    x = x_ref[...].astype(jnp.float32)             # (T, BP)
    wih = wih_ref[...]                             # (1, G)
    whh = whh_ref[...]                             # (H, G)
    bias = b_ref[...]                              # (1, G)

    # Input projection for all timesteps at once (VPU broadcast-FMA, K=1 would
    # be a pathological MXU shape).  Bias folded here, off the recurrent path.
    xg = x[:, :, None] * wih + bias                # (T, BP, G)

    # Precomputed lane mask: lanes [2H, 3H) are the "g" gate (tanh), rest sigmoid.
    lane = lax.broadcasted_iota(jnp.int32, (BP, G), 1)
    g_mask = (lane >= 2 * H) & (lane < 3 * H)

    h = jnp.zeros((BP, H), jnp.float32)
    c = jnp.zeros((BP, H), jnp.float32)
    hs = []
    for t in range(T):                             # static unroll, T = 8
        gates = xg[t] + jnp.dot(h, whh, preferred_element_type=jnp.float32)
        # One tanh + one sigmoid over the full 128-lane gates vreg (EUP slot).
        sig = 1.0 / (1.0 + jnp.exp(-gates))
        act = jnp.where(g_mask, jnp.tanh(gates), sig)
        i_g = act[:, 0:H]
        f_g = act[:, H:2 * H]
        g_g = act[:, 2 * H:3 * H]
        o_g = act[:, 3 * H:4 * H]
        c = f_g * c + i_g * g_g
        h = o_g * jnp.tanh(c)
        hs.append(h)                               # held in vregs, stored later

    # Deferred Linear + bias + residual + single store.
    h_all = jnp.stack(hs, axis=0)                  # (T, BP, H)
    wlin = wlin_ref[...].reshape(1, 1, H)          # linear.weight (1, H) -> (1,1,H)
    y = jnp.sum(h_all * wlin, axis=-1)             # (T, BP)   lane-reduce (XLU)
    y = y + blin_ref[...] + x                      # linear.bias + residual (audio)
    out_ref[...] = y.astype(out_ref.dtype)


def run_amp_kernel(x_tm, wih_row0, w_hh_t, b_eff, w_lin, b_lin):
    return pl.pallas_call(
        amp_lstm_kernel,
        out_shape=jax.ShapeDtypeStruct((T, BP), jnp.float32),
        grid=(1,),
        in_specs=[
            pl.BlockSpec((T, BP),    lambda i: (0, 0)),
            pl.BlockSpec((1, G),     lambda i: (0, 0)),
            pl.BlockSpec((H, G),     lambda i: (0, 0)),
            pl.BlockSpec((1, G),     lambda i: (0, 0)),
            pl.BlockSpec((C_OUT, H), lambda i: (0, 0)),
            pl.BlockSpec((1, C_OUT), lambda i: (0, 0)),
        ],
        out_specs=pl.BlockSpec((T, BP), lambda i: (0, 0)),
        # Single batch group here; with more batch groups this axis would shard
        # independent batch work across v7x's two TensorCores.
        compiler_params=pltpu.CompilerParams(
            dimension_semantics=("parallel",)),
    )(x_tm, wih_row0, w_hh_t, b_eff, w_lin, b_lin)


def amp_forward(params, x, cond=None):
    """AmpModel.forward for the conditioned SimpleRNN case.

    x: (B, T, 1) audio.  The conditioning channel (scalar, default 0.5) is
    folded into the effective LSTM bias; LSTM + Linear + residual run inside
    the Pallas kernel.
    """
    w_ih_t, w_hh_t, b, w_lin, b_lin = params
    c = 0.5 if cond is None else cond
    nb = x.shape[0]
    assert nb <= BP

    # Fold the constant conditioning channel into the bias:
    #   x_in @ W_ih^T + b  ==  x_audio * W_ih^T[0] + (b + cond * W_ih^T[1])
    b_eff = b + c * w_ih_t[1:2, :]                              # (1, G)
    wih_row0 = w_ih_t[0:1, :]                                   # (1, G)

    x_a = x[..., 0]                                             # (B, T) audio
    # Pad batch to 8 rows so every sublane / MXU row is used; padded rows are
    # independent and sliced off below.
    x_pad = jnp.pad(x_a, ((0, BP - nb), (0, 0)))                # (BP, T)
    x_tm = jnp.transpose(x_pad, (1, 0))                         # (T, BP)

    y_tb = run_amp_kernel(x_tm, wih_row0, w_hh_t, b_eff, w_lin, b_lin)  # (T, BP)
    y = jnp.transpose(y_tb, (1, 0))[:nb]                        # (B, T)
    return y[..., None]                                         # (B, T, 1)


def reference_forward(params, x, cond=None):
    """Pure-JAX reference (PyTorch LSTM gate order i,f,g,o, batch_first)."""
    w_ih_t, w_hh_t, b, w_lin, b_lin = params
    c0 = 0.5 if cond is None else cond
    x_in = jnp.concatenate([x, c0 * jnp.ones_like(x)], axis=2)  # (B, T, 2)
    x_tm = jnp.transpose(x_in, (1, 0, 2))                       # (T, B, 2)
    nb = x.shape[0]

    def cell(carry, x_t):
        h, c = carry
        gates = x_t @ w_ih_t + h @ w_hh_t + b
        i = jax.nn.sigmoid(gates[:, 0:H])
        f = jax.nn.sigmoid(gates[:, H:2 * H])
        g = jnp.tanh(gates[:, 2 * H:3 * H])
        o = jax.nn.sigmoid(gates[:, 3 * H:4 * H])
        c = f * c + i * g
        h = o * jnp.tanh(c)
        y = h @ w_lin.T + b_lin
        return (h, c), y

    init = (jnp.zeros((nb, H), jnp.float32), jnp.zeros((nb, H), jnp.float32))
    _, y_tm = lax.scan(cell, init, x_tm)
    y = jnp.transpose(y_tm, (1, 0, 2)) + x_in[..., 0:C_OUT]
    return y


def init_params(key):
    # TODO(synk): real weights come from the guitar-ml JSON state_dict
    # (Get_Open_Amp_Model); here they are random-initialized in-script.
    k1, k2, k3, k4, k5 = jax.random.split(key, 5)
    scale = 0.3
    w_ih_t = scale * jax.random.normal(k1, (C_IN, G), jnp.float32)   # W_ih^T
    w_hh_t = scale * jax.random.normal(k2, (H, G), jnp.float32)      # W_hh^T
    b = scale * jax.random.normal(k3, (1, G), jnp.float32)           # b_ih + b_hh
    w_lin = scale * jax.random.normal(k4, (C_OUT, H), jnp.float32)   # linear.weight
    b_lin = scale * jax.random.normal(k5, (1, C_OUT), jnp.float32)   # linear.bias
    return (w_ih_t, w_hh_t, b, w_lin, b_lin)


if __name__ == "__main__":
    key = jax.random.PRNGKey(0)
    kx, kp = jax.random.split(key)
    params = init_params(kp)
    x = jax.random.normal(kx, (B, T, 1), jnp.float32)   # raw audio input

    out = amp_forward(params, x, cond=None)             # default cond = 0.5
    out = jax.block_until_ready(out)

    ref = reference_forward(params, x, cond=None)
    assert out.shape == (B, T, C_OUT)
    assert jnp.allclose(out, ref, atol=1e-4, rtol=1e-4), (out, ref)

    print("KERNEL_OK")
</pallas_src>

<mosaic_0001>
module attributes {stable_mosaic.version = 11 : i64} {
  func.func @amp_lstm_kernel(%arg0: i32, %arg1: memref<8x8xf32, #tpu.memory_space<vmem>>, %arg2: memref<1x128xf32, #tpu.memory_space<vmem>>, %arg3: memref<32x128xf32, #tpu.memory_space<vmem>>, %arg4: memref<1x128xf32, #tpu.memory_space<vmem>>, %arg5: memref<1x32xf32, #tpu.memory_space<vmem>>, %arg6: memref<1x1xf32, #tpu.memory_space<vmem>>, %arg7: memref<8x8xf32, #tpu.memory_space<vmem>>) attributes {dimension_semantics = [#tpu.dimension_semantics<parallel>], iteration_bounds = array<i64: 1>, scalar_prefetch = 0 : i64, scratch_operands = 0 : i64, tpu.core_type = #tpu.core_type<tc>, window_params = [{pipeline_mode = #tpu.pipeline_mode<synchronous>, transform_indices = @transform_0, window_bounds = array<i64: 8, 8>}, {pipeline_mode = #tpu.pipeline_mode<synchronous>, transform_indices = @transform_1, window_bounds = array<i64: 1, 128>}, {pipeline_mode = #tpu.pipeline_mode<synchronous>, transform_indices = @transform_2, window_bounds = array<i64: 32, 128>}, {pipeline_mode = #tpu.pipeline_mode<synchronous>, transform_indices = @transform_3, window_bounds = array<i64: 1, 128>}, {pipeline_mode = #tpu.pipeline_mode<synchronous>, transform_indices = @transform_4, window_bounds = array<i64: 1, 32>}, {pipeline_mode = #tpu.pipeline_mode<synchronous>, transform_indices = @transform_5, window_bounds = array<i64: 1, 1>}, {pipeline_mode = #tpu.pipeline_mode<synchronous>, transform_indices = @transform_6, window_bounds = array<i64: 8, 8>}]} {
    %c0 = arith.constant 0 : index
    %c0_0 = arith.constant 0 : index
    %0 = vector.load %arg1[%c0, %c0_0] : memref<8x8xf32, #tpu.memory_space<vmem>>, vector<8x8xf32>
    %c0_1 = arith.constant 0 : index
    %c0_2 = arith.constant 0 : index
    %1 = vector.load %arg2[%c0_1, %c0_2] : memref<1x128xf32, #tpu.memory_space<vmem>>, vector<1x128xf32>
    %c0_3 = arith.constant 0 : index
    %c0_4 = arith.constant 0 : index
    %2 = vector.load %arg3[%c0_3, %c0_4] : memref<32x128xf32, #tpu.memory_space<vmem>>, vector<32x128xf32>
    %c0_5 = arith.constant 0 : index
    %c0_6 = arith.constant 0 : index
    %3 = vector.load %arg4[%c0_5, %c0_6] : memref<1x128xf32, #tpu.memory_space<vmem>>, vector<1x128xf32>
    %4 = vector.shape_cast %0 : vector<8x8xf32> to vector<8x8x1xf32>
    %5 = vector.shape_cast %1 : vector<1x128xf32> to vector<1x1x128xf32>
    %6 = vector.broadcast %4 : vector<8x8x1xf32> to vector<8x8x128xf32>
    %7 = vector.broadcast %5 : vector<1x1x128xf32> to vector<8x8x128xf32>
    %8 = arith.mulf %6, %7 : vector<8x8x128xf32>
    %9 = vector.shape_cast %3 : vector<1x128xf32> to vector<1x1x128xf32>
    %10 = vector.broadcast %9 : vector<1x1x128xf32> to vector<8x8x128xf32>
    %11 = arith.addf %8, %10 : vector<8x8x128xf32>
    %12 = tpu.iota {dimensions = array<i32: 1>} : vector<8x128xi32>
    %c64_i32 = arith.constant 64 : i32
    %13 = vector.broadcast %c64_i32 : i32 to vector<8x128xi32>
    %14 = arith.cmpi sge, %12, %13 : vector<8x128xi32>
    %c96_i32 = arith.constant 96 : i32
    %15 = vector.broadcast %c96_i32 : i32 to vector<8x128xi32>
    %16 = arith.cmpi slt, %12, %15 : vector<8x128xi32>
    %17 = arith.andi %14, %16 : vector<8x128xi1>
    %cst = arith.constant 0.000000e+00 : f32
    %18 = vector.broadcast %cst : f32 to vector<8x32xf32>
    %cst_7 = arith.constant 0.000000e+00 : f32
    %19 = vector.broadcast %cst_7 : f32 to vector<8x32xf32>
    %20 = vector.extract_strided_slice %11 {offsets = [0, 0, 0], sizes = [1, 8, 128], strides = [1, 1, 1]} : vector<8x8x128xf32> to vector<1x8x128xf32>
    %21 = vector.shape_cast %20 : vector<1x8x128xf32> to vector<8x128xf32>
    %cst_8 = arith.constant dense<0.000000e+00> : vector<8x128xf32>
    %22 = tpu.matmul %18, %2, %cst_8 {dimension_numbers = #tpu.dot_dimension_numbers<[1], [0], [0], [1], [0, 0, 1, 1], [], []>} : vector<8x32xf32>, vector<32x128xf32>, vector<8x128xf32> -> vector<8x128xf32>
    %23 = arith.addf %21, %22 : vector<8x128xf32>
    %cst_9 = arith.constant 0.000000e+00 : f32
    %24 = vector.broadcast %cst_9 : f32 to vector<8x128xf32>
    %25 = arith.subf %24, %23 : vector<8x128xf32>
    %26 = math.exp %25 : vector<8x128xf32>
    %cst_10 = arith.constant 1.000000e+00 : f32
    %27 = vector.broadcast %cst_10 : f32 to vector<8x128xf32>
    %28 = arith.addf %27, %26 : vector<8x128xf32>
    %cst_11 = arith.constant 1.000000e+00 : f32
    %29 = vector.broadcast %cst_11 : f32 to vector<8x128xf32>
    %30 = arith.divf %29, %28 : vector<8x128xf32>
    %31 = math.tanh %23 : vector<8x128xf32>
    %32 = arith.select %17, %31, %30 : vector<8x128xi1>, vector<8x128xf32>
    %33 = vector.extract_strided_slice %32 {offsets = [0, 0], sizes = [8, 32], strides = [1, 1]} : vector<8x128xf32> to vector<8x32xf32>
    %34 = vector.extract_strided_slice %32 {offsets = [0, 32], sizes = [8, 32], strides = [1, 1]} : vector<8x128xf32> to vector<8x32xf32>
    %35 = vector.extract_strided_slice %32 {offsets = [0, 64], sizes = [8, 32], strides = [1, 1]} : vector<8x128xf32> to vector<8x32xf32>
    %36 = vector.extract_strided_slice %32 {offsets = [0, 96], sizes = [8, 32], strides = [1, 1]} : vector<8x128xf32> to vector<8x32xf32>
    %37 = arith.mulf %34, %19 : vector<8x32xf32>
    %38 = arith.mulf %33, %35 : vector<8x32xf32>
    %39 = arith.addf %37, %38 : vector<8x32xf32>
    %40 = math.tanh %39 : vector<8x32xf32>
    %41 = arith.mulf %36, %40 : vector<8x32xf32>
    %42 = vector.extract_strided_slice %11 {offsets = [1, 0, 0], sizes = [1, 8, 128], strides = [1, 1, 1]} : vector<8x8x128xf32> to vector<1x8x128xf32>
    %43 = vector.shape_cast %42 : vector<1x8x128xf32> to vector<8x128xf32>
    %cst_12 = arith.constant dense<0.000000e+00> : vector<8x128xf32>
    %44 = tpu.matmul %41, %2, %cst_12 {dimension_numbers = #tpu.dot_dimension_numbers<[1], [0], [0], [1], [0, 0, 1, 1], [], []>} : vector<8x32xf32>, vector<32x128xf32>, vector<8x128xf32> -> vector<8x128xf32>
    %45 = arith.addf %43, %44 : vector<8x128xf32>
    %cst_13 = arith.constant 0.000000e+00 : f32
    %46 = vector.broadcast %cst_13 : f32 to vector<8x128xf32>
    %47 = arith.subf %46, %45 : vector<8x128xf32>
    %48 = math.exp %47 : vector<8x128xf32>
    %cst_14 = arith.constant 1.000000e+00 : f32
    %49 = vector.broadcast %cst_14 : f32 to vector<8x128xf32>
    %50 = arith.addf %49, %48 : vector<8x128xf32>
    %cst_15 = arith.constant 1.000000e+00 : f32
    %51 = vector.broadcast %cst_15 : f32 to vector<8x128xf32>
    %52 = arith.divf %51, %50 : vector<8x128xf32>
    %53 = math.tanh %45 : vector<8x128xf32>
    %54 = arith.select %17, %53, %52 : vector<8x128xi1>, vector<8x128xf32>
    %55 = vector.extract_strided_slice %54 {offsets = [0, 0], sizes = [8, 32], strides = [1, 1]} : vector<8x128xf32> to vector<8x32xf32>
    %56 = vector.extract_strided_slice %54 {offsets = [0, 32], sizes = [8, 32], strides = [1, 1]} : vector<8x128xf32> to vector<8x32xf32>
    %57 = vector.extract_strided_slice %54 {offsets = [0, 64], sizes = [8, 32], strides = [1, 1]} : vector<8x128xf32> to vector<8x32xf32>
    %58 = vector.extract_strided_slice %54 {offsets = [0, 96], sizes = [8, 32], strides = [1, 1]} : vector<8x128xf32> to vector<8x32xf32>
    %59 = arith.mulf %56, %39 : vector<8x32xf32>
    %60 = arith.mulf %55, %57 : vector<8x32xf32>
    %61 = arith.addf %59, %60 : vector<8x32xf32>
    %62 = math.tanh %61 : vector<8x32xf32>
    %63 = arith.mulf %58, %62 : vector<8x32xf32>
    %64 = vector.extract_strided_slice %11 {offsets = [2, 0, 0], sizes = [1, 8, 128], strides = [1, 1, 1]} : vector<8x8x128xf32> to vector<1x8x128xf32>
    %65 = vector.shape_cast %64 : vector<1x8x128xf32> to vector<8x128xf32>
    %cst_16 = arith.constant dense<0.000000e+00> : vector<8x128xf32>
    %66 = tpu.matmul %63, %2, %cst_16 {dimension_numbers = #tpu.dot_dimension_numbers<[1], [0], [0], [1], [0, 0, 1, 1], [], []>} : vector<8x32xf32>, vector<32x128xf32>, vector<8x128xf32> -> vector<8x128xf32>
    %67 = arith.addf %65, %66 : vector<8x128xf32>
    %cst_17 = arith.constant 0.000000e+00 : f32
    %68 = vector.broadcast %cst_17 : f32 to vector<8x128xf32>
    %69 = arith.subf %68, %67 : vector<8x128xf32>
    %70 = math.exp %69 : vector<8x128xf32>
    %cst_18 = arith.constant 1.000000e+00 : f32
    %71 = vector.broadcast %cst_18 : f32 to vector<8x128xf32>
    %72 = arith.addf %71, %70 : vector<8x128xf32>
    %cst_19 = arith.constant 1.000000e+00 : f32
    %73 = vector.broadcast %cst_19 : f32 to vector<8x128xf32>
    %74 = arith.divf %73, %72 : vector<8x128xf32>
    %75 = math.tanh %67 : vector<8x128xf32>
    %76 = arith.select %17, %75, %74 : vector<8x128xi1>, vector<8x128xf32>
    %77 = vector.extract_strided_slice %76 {offsets = [0, 0], sizes = [8, 32], strides = [1, 1]} : vector<8x128xf32> to vector<8x32xf32>
    %78 = vector.extract_strided_slice %76 {offsets = [0, 32], sizes = [8, 32], strides = [1, 1]} : vector<8x128xf32> to vector<8x32xf32>
    %79 = vector.extract_strided_slice %76 {offsets = [0, 64], sizes = [8, 32], strides = [1, 1]} : vector<8x128xf32> to vector<8x32xf32>
    %80 = vector.extract_strided_slice %76 {offsets = [0, 96], sizes = [8, 32], strides = [1, 1]} : vector<8x128xf32> to vector<8x32xf32>
    %81 = arith.mulf %78, %61 : vector<8x32xf32>
    %82 = arith.mulf %77, %79 : vector<8x32xf32>
    %83 = arith.addf %81, %82 : vector<8x32xf32>
    %84 = math.tanh %83 : vector<8x32xf32>
    %85 = arith.mulf %80, %84 : vector<8x32xf32>
    %86 = vector.extract_strided_slice %11 {offsets = [3, 0, 0], sizes = [1, 8, 128], strides = [1, 1, 1]} : vector<8x8x128xf32> to vector<1x8x128xf32>
    %87 = vector.shape_cast %86 : vector<1x8x128xf32> to vector<8x128xf32>
    %cst_20 = arith.constant dense<0.000000e+00> : vector<8x128xf32>
    %88 = tpu.matmul %85, %2, %cst_20 {dimension_numbers = #tpu.dot_dimension_numbers<[1], [0], [0], [1], [0, 0, 1, 1], [], []>} : vector<8x32xf32>, vector<32x128xf32>, vector<8x128xf32> -> vector<8x128xf32>
    %89 = arith.addf %87, %88 : vector<8x128xf32>
    %cst_21 = arith.constant 0.000000e+00 : f32
    %90 = vector.broadcast %cst_21 : f32 to vector<8x128xf32>
    %91 = arith.subf %90, %89 : vector<8x128xf32>
    %92 = math.exp %91 : vector<8x128xf32>
    %cst_22 = arith.constant 1.000000e+00 : f32
    %93 = vector.broadcast %cst_22 : f32 to vector<8x128xf32>
    %94 = arith.addf %93, %92 : vector<8x128xf32>
    %cst_23 = arith.constant 1.000000e+00 : f32
    %95 = vector.broadcast %cst_23 : f32 to vector<8x128xf32>
    %96 = arith.divf %95, %94 : vector<8x128xf32>
    %97 = math.tanh %89 : vector<8x128xf32>
    %98 = arith.select %17, %97, %96 : vector<8x128xi1>, vector<8x128xf32>
    %99 = vector.extract_strided_slice %98 {offsets = [0, 0], sizes = [8, 32], strides = [1, 1]} : vector<8x128xf32> to vector<8x32xf32>
    %100 = vector.extract_strided_slice %98 {offsets = [0, 32], sizes = [8, 32], strides = [1, 1]} : vector<8x128xf32> to vector<8x32xf32>
    %101 = vector.extract_strided_slice %98 {offsets = [0, 64], sizes = [8, 32], strides = [1, 1]} : vector<8x128xf32> to vector<8x32xf32>
    %102 = vector.extract_strided_slice %98 {offsets = [0, 96], sizes = [8, 32], strides = [1, 1]} : vector<8x128xf32> to vector<8x32xf32>
    %103 = arith.mulf %100, %83 : vector<8x32xf32>
    %104 = arith.mulf %99, %101 : vector<8x32xf32>
    %105 = arith.addf %103, %104 : vector<8x32xf32>
    %106 = math.tanh %105 : vector<8x32xf32>
    %107 = arith.mulf %102, %106 : vector<8x32xf32>
    %108 = vector.extract_strided_slice %11 {offsets = [4, 0, 0], sizes = [1, 8, 128], strides = [1, 1, 1]} : vector<8x8x128xf32> to vector<1x8x128xf32>
    %109 = vector.shape_cast %108 : vector<1x8x128xf32> to vector<8x128xf32>
    %cst_24 = arith.constant dense<0.000000e+00> : vector<8x128xf32>
    %110 = tpu.matmul %107, %2, %cst_24 {dimension_numbers = #tpu.dot_dimension_numbers<[1], [0], [0], [1], [0, 0, 1, 1], [], []>} : vector<8x32xf32>, vector<32x128xf32>, vector<8x128xf32> -> vector<8x128xf32>
    %111 = arith.addf %109, %110 : vector<8x128xf32>
    %cst_25 = arith.constant 0.000000e+00 : f32
    %112 = vector.broadcast %cst_25 : f32 to vector<8x128xf32>
    %113 = arith.subf %112, %111 : vector<8x128xf32>
    %114 = math.exp %113 : vector<8x128xf32>
    %cst_26 = arith.constant 1.000000e+00 : f32
    %115 = vector.broadcast %cst_26 : f32 to vector<8x128xf32>
    %116 = arith.addf %115, %114 : vector<8x128xf32>
    %cst_27 = arith.constant 1.000000e+00 : f32
    %117 = vector.broadcast %cst_27 : f32 to vector<8x128xf32>
    %118 = arith.divf %117, %116 : vector<8x128xf32>
    %119 = math.tanh %111 : vector<8x128xf32>
    %120 = arith.select %17, %119, %118 : vector<8x128xi1>, vector<8x128xf32>
    %121 = vector.extract_strided_slice %120 {offsets = [0, 0], sizes = [8, 32], strides = [1, 1]} : vector<8x128xf32> to vector<8x32xf32>
    %122 = vector.extract_strided_slice %120 {offsets = [0, 32], sizes = [8, 32], strides = [1, 1]} : vector<8x128xf32> to vector<8x32xf32>
    %123 = vector.extract_strided_slice %120 {offsets = [0, 64], sizes = [8, 32], strides = [1, 1]} : vector<8x128xf32> to vector<8x32xf32>
    %124 = vector.extract_strided_slice %120 {offsets = [0, 96], sizes = [8, 32], strides = [1, 1]} : vector<8x128xf32> to vector<8x32xf32>
    %125 = arith.mulf %122, %105 : vector<8x32xf32>
    %126 = arith.mulf %121, %123 : vector<8x32xf32>
    %127 = arith.addf %125, %126 : vector<8x32xf32>
    %128 = math.tanh %127 : vector<8x32xf32>
    %129 = arith.mulf %124, %128 : vector<8x32xf32>
    %130 = vector.extract_strided_slice %11 {offsets = [5, 0, 0], sizes = [1, 8, 128], strides = [1, 1, 1]} : vector<8x8x128xf32> to vector<1x8x128xf32>
    %131 = vector.shape_cast %130 : vector<1x8x128xf32> to vector<8x128xf32>
    %cst_28 = arith.constant dense<0.000000e+00> : vector<8x128xf32>
    %132 = tpu.matmul %129, %2, %cst_28 {dimension_numbers = #tpu.dot_dimension_numbers<[1], [0], [0], [1], [0, 0, 1, 1], [], []>} : vector<8x32xf32>, vector<32x128xf32>, vector<8x128xf32> -> vector<8x128xf32>
    %133 = arith.addf %131, %132 : vector<8x128xf32>
    %cst_29 = arith.constant 0.000000e+00 : f32
    %134 = vector.broadcast %cst_29 : f32 to vector<8x128xf32>
    %135 = arith.subf %134, %133 : vector<8x128xf32>
    %136 = math.exp %135 : vector<8x128xf32>
    %cst_30 = arith.constant 1.000000e+00 : f32
    %137 = vector.broadcast %cst_30 : f32 to vector<8x128xf32>
    %138 = arith.addf %137, %136 : vector<8x128xf32>
    %cst_31 = arith.constant 1.000000e+00 : f32
    %139 = vector.broadcast %cst_31 : f32 to vector<8x128xf32>
    %140 = arith.divf %139, %138 : vector<8x128xf32>
    %141 = math.tanh %133 : vector<8x128xf32>
    %142 = arith.select %17, %141, %140 : vector<8x128xi1>, vector<8x128xf32>
    %143 = vector.extract_strided_slice %142 {offsets = [0, 0], sizes = [8, 32], strides = [1, 1]} : vector<8x128xf32> to vector<8x32xf32>
    %144 = vector.extract_strided_slice %142 {offsets = [0, 32], sizes = [8, 32], strides = [1, 1]} : vector<8x128xf32> to vector<8x32xf32>
    %145 = vector.extract_strided_slice %142 {offsets = [0, 64], sizes = [8, 32], strides = [1, 1]} : vector<8x128xf32> to vector<8x32xf32>
    %146 = vector.extract_strided_slice %142 {offsets = [0, 96], sizes = [8, 32], strides = [1, 1]} : vector<8x128xf32> to vector<8x32xf32>
    %147 = arith.mulf %144, %127 : vector<8x32xf32>
    %148 = arith.mulf %143, %145 : vector<8x32xf32>
    %149 = arith.addf %147, %148 : vector<8x32xf32>
    %150 = math.tanh %149 : vector<8x32xf32>
    %151 = arith.mulf %146, %150 : vector<8x32xf32>
    %152 = vector.extract_strided_slice %11 {offsets = [6, 0, 0], sizes = [1, 8, 128], strides = [1, 1, 1]} : vector<8x8x128xf32> to vector<1x8x128xf32>
    %153 = vector.shape_cast %152 : vector<1x8x128xf32> to vector<8x128xf32>
    %cst_32 = arith.constant dense<0.000000e+00> : vector<8x128xf32>
    %154 = tpu.matmul %151, %2, %cst_32 {dimension_numbers = #tpu.dot_dimension_numbers<[1], [0], [0], [1], [0, 0, 1, 1], [], []>} : vector<8x32xf32>, vector<32x128xf32>, vector<8x128xf32> -> vector<8x128xf32>
    %155 = arith.addf %153, %154 : vector<8x128xf32>
    %cst_33 = arith.constant 0.000000e+00 : f32
    %156 = vector.broadcast %cst_33 : f32 to vector<8x128xf32>
    %157 = arith.subf %156, %155 : vector<8x128xf32>
    %158 = math.exp %157 : vector<8x128xf32>
    %cst_34 = arith.constant 1.000000e+00 : f32
    %159 = vector.broadcast %cst_34 : f32 to vector<8x128xf32>
    %160 = arith.addf %159, %158 : vector<8x128xf32>
    %cst_35 = arith.constant 1.000000e+00 : f32
    %161 = vector.broadcast %cst_35 : f32 to vector<8x128xf32>
    %162 = arith.divf %161, %160 : vector<8x128xf32>
    %163 = math.tanh %155 : vector<8x128xf32>
    %164 = arith.select %17, %163, %162 : vector<8x128xi1>, vector<8x128xf32>
    %165 = vector.extract_strided_slice %164 {offsets = [0, 0], sizes = [8, 32], strides = [1, 1]} : vector<8x128xf32> to vector<8x32xf32>
    %166 = vector.extract_strided_slice %164 {offsets = [0, 32], sizes = [8, 32], strides = [1, 1]} : vector<8x128xf32> to vector<8x32xf32>
    %167 = vector.extract_strided_slice %164 {offsets = [0, 64], sizes = [8, 32], strides = [1, 1]} : vector<8x128xf32> to vector<8x32xf32>
    %168 = vector.extract_strided_slice %164 {offsets = [0, 96], sizes = [8, 32], strides = [1, 1]} : vector<8x128xf32> to vector<8x32xf32>
    %169 = arith.mulf %166, %149 : vector<8x32xf32>
    %170 = arith.mulf %165, %167 : vector<8x32xf32>
    %171 = arith.addf %169, %170 : vector<8x32xf32>
    %172 = math.tanh %171 : vector<8x32xf32>
    %173 = arith.mulf %168, %172 : vector<8x32xf32>
    %174 = vector.extract_strided_slice %11 {offsets = [7, 0, 0], sizes = [1, 8, 128], strides = [1, 1, 1]} : vector<8x8x128xf32> to vector<1x8x128xf32>
    %175 = vector.shape_cast %174 : vector<1x8x128xf32> to vector<8x128xf32>
    %cst_36 = arith.constant dense<0.000000e+00> : vector<8x128xf32>
    %176 = tpu.matmul %173, %2, %cst_36 {dimension_numbers = #tpu.dot_dimension_numbers<[1], [0], [0], [1], [0, 0, 1, 1], [], []>} : vector<8x32xf32>, vector<32x128xf32>, vector<8x128xf32> -> vector<8x128xf32>
    %177 = arith.addf %175, %176 : vector<8x128xf32>
    %cst_37 = arith.constant 0.000000e+00 : f32
    %178 = vector.broadcast %cst_37 : f32 to vector<8x128xf32>
    %179 = arith.subf %178, %177 : vector<8x128xf32>
    %180 = math.exp %179 : vector<8x128xf32>
    %cst_38 = arith.constant 1.000000e+00 : f32
    %181 = vector.broadcast %cst_38 : f32 to vector<8x128xf32>
    %182 = arith.addf %181, %180 : vector<8x128xf32>
    %cst_39 = arith.constant 1.000000e+00 : f32
    %183 = vector.broadcast %cst_39 : f32 to vector<8x128xf32>
    %184 = arith.divf %183, %182 : vector<8x128xf32>
    %185 = math.tanh %177 : vector<8x128xf32>
    %186 = arith.select %17, %185, %184 : vector<8x128xi1>, vector<8x128xf32>
    %187 = vector.extract_strided_slice %186 {offsets = [0, 0], sizes = [8, 32], strides = [1, 1]} : vector<8x128xf32> to vector<8x32xf32>
    %188 = vector.extract_strided_slice %186 {offsets = [0, 32], sizes = [8, 32], strides = [1, 1]} : vector<8x128xf32> to vector<8x32xf32>
    %189 = vector.extract_strided_slice %186 {offsets = [0, 64], sizes = [8, 32], strides = [1, 1]} : vector<8x128xf32> to vector<8x32xf32>
    %190 = vector.extract_strided_slice %186 {offsets = [0, 96], sizes = [8, 32], strides = [1, 1]} : vector<8x128xf32> to vector<8x32xf32>
    %191 = arith.mulf %188, %171 : vector<8x32xf32>
    %192 = arith.mulf %187, %189 : vector<8x32xf32>
    %193 = arith.addf %191, %192 : vector<8x32xf32>
    %194 = math.tanh %193 : vector<8x32xf32>
    %195 = arith.mulf %190, %194 : vector<8x32xf32>
    %196 = vector.shape_cast %41 : vector<8x32xf32> to vector<1x8x32xf32>
    %197 = vector.shape_cast %63 : vector<8x32xf32> to vector<1x8x32xf32>
    %198 = vector.shape_cast %85 : vector<8x32xf32> to vector<1x8x32xf32>
    %199 = vector.shape_cast %107 : vector<8x32xf32> to vector<1x8x32xf32>
    %200 = vector.shape_cast %129 : vector<8x32xf32> to vector<1x8x32xf32>
    %201 = vector.shape_cast %151 : vector<8x32xf32> to vector<1x8x32xf32>
    %202 = vector.shape_cast %173 : vector<8x32xf32> to vector<1x8x32xf32>
    %203 = vector.shape_cast %195 : vector<8x32xf32> to vector<1x8x32xf32>
    %204 = tpu.concatenate %196, %197, %198, %199, %200, %201, %202, %203 in 0 : vector<1x8x32xf32>, vector<1x8x32xf32>, vector<1x8x32xf32>, vector<1x8x32xf32>, vector<1x8x32xf32>, vector<1x8x32xf32>, vector<1x8x32xf32>, vector<1x8x32xf32> -> vector<8x8x32xf32>
    %c0_40 = arith.constant 0 : index
    %c0_41 = arith.constant 0 : index
    %205 = vector.load %arg5[%c0_40, %c0_41] : memref<1x32xf32, #tpu.memory_space<vmem>>, vector<1x32xf32>
    %206 = vector.shape_cast %205 : vector<1x32xf32> to vector<1x1x32xf32>
    %207 = vector.broadcast %206 : vector<1x1x32xf32> to vector<8x8x32xf32>
    %208 = arith.mulf %204, %207 : vector<8x8x32xf32>
    %cst_42 = arith.constant dense<0.000000e+00> : vector<8x8xf32>
    %209 = vector.multi_reduction <add>, %208, %cst_42 [2] : vector<8x8x32xf32> to vector<8x8xf32>
    %c0_43 = arith.constant 0 : index
    %c0_44 = arith.constant 0 : index
    %210 = vector.load %arg6[%c0_43, %c0_44] : memref<1x1xf32, #tpu.memory_space<vmem>>, vector<1x1xf32>
    %211 = vector.broadcast %210 : vector<1x1xf32> to vector<8x8xf32>
    %212 = arith.addf %209, %211 : vector<8x8xf32>
    %213 = arith.addf %212, %0 : vector<8x8xf32>
    %c0_45 = arith.constant 0 : index
    %c0_46 = arith.constant 0 : index
    %214 = vector.load %arg7[%c0_45, %c0_46] : memref<8x8xf32, #tpu.memory_space<vmem>>, vector<8x8xf32>
    tpu.vector_store %arg7[%c0_45, %c0_46], %213 {strides = array<i32>} : memref<8x8xf32, #tpu.memory_space<vmem>>, vector<8x8xf32>,
    return
  }
  func.func @transform_0(%arg0: i32) -> (i32, i32) {
    %c0_i32 = arith.constant 0 : i32
    %c0_i32_0 = arith.constant 0 : i32
    %c0_i32_1 = arith.constant 0 : i32
    return %c0_i32, %c0_i32_0 : i32, i32
  }
  func.func @transform_1(%arg0: i32) -> (i32, i32) {
    %c0_i32 = arith.constant 0 : i32
    %c0_i32_0 = arith.constant 0 : i32
    %c0_i32_1 = arith.constant 0 : i32
    return %c0_i32, %c0_i32_0 : i32, i32
  }
  func.func @transform_2(%arg0: i32) -> (i32, i32) {
    %c0_i32 = arith.constant 0 : i32
    %c0_i32_0 = arith.constant 0 : i32
    %c0_i32_1 = arith.constant 0 : i32
    return %c0_i32, %c0_i32_0 : i32, i32
  }
  func.func @transform_3(%arg0: i32) -> (i32, i32) {
    %c0_i32 = arith.constant 0 : i32
    %c0_i32_0 = arith.constant 0 : i32
    %c0_i32_1 = arith.constant 0 : i32
    return %c0_i32, %c0_i32_0 : i32, i32
  }
  func.func @transform_4(%arg0: i32) -> (i32, i32) {
    %c0_i32 = arith.constant 0 : i32
    %c0_i32_0 = arith.constant 0 : i32
    %c0_i32_1 = arith.constant 0 : i32
    return %c0_i32, %c0_i32_0 : i32, i32
  }
  func.func @transform_5(%arg0: i32) -> (i32, i32) {
    %c0_i32 = arith.constant 0 : i32
    %c0_i32_0 = arith.constant 0 : i32
    %c0_i32_1 = arith.constant 0 : i32
    return %c0_i32, %c0_i32_0 : i32, i32
  }
  func.func @transform_6(%arg0: i32) -> (i32, i32) {
    %c0_i32 = arith.constant 0 : i32
    %c0_i32_0 = arith.constant 0 : i32
    %c0_i32_1 = arith.constant 0 : i32
    return %c0_i32, %c0_i32_0 : i32, i32
  }
}

</mosaic_0001>

<llo_original>
// kernel: tpu_custom_call.1
$region0: #{tpu_custom_call.1}
  #allocation0 [shape = 'u32[]', space=smem, size = 0x4, offset = 0x4, fixed_abs, tag = 'smem constant byte address 0x4 - core index']
  #allocation1 [shape = 'u32[144,128]{1,0:T(1,128)}', space=vmem, size = 0x12000, scoped, tag = 'internal scratch']
  #allocation2 [shape = 'f32[1,1]{1,0:T(1,128)S(1)}', space=vmem, size = 0x200, scoped, tag = 'scoped memory for tpu_custom_call.1']
  %s0 = inlined_call_operand.hbm [shape: f32[8,8], index: 0, kind: input, shape index: {}]
  %s1 = inlined_call_operand.vmem [shape: f32[1,128], index: 1, kind: input, shape index: {}]
  %s2 = inlined_call_operand.hbm [shape: f32[32,128], index: 2, kind: input, shape index: {}]
  %s3 = inlined_call_operand.vmem [shape: f32[1,128], index: 3, kind: input, shape index: {}]
  %s4 = inlined_call_operand.vmem [shape: f32[1,32], index: 4, kind: input, shape index: {}]
  %s5 = inlined_call_operand.<no memory space> [shape: f32[1,1], index: 5, kind: input, shape index: {}]
  %s6 = inlined_call_operand.hbm [shape: f32[8,8], index: 6, kind: output, shape index: {}]
  %s7 = sld [smem:[#allocation0]]
  $region42: #{tpu_custom_call.1} parent=0
    _
  %s9 = ssub.s32 1, %s7
  %s10 = scalar_select 0, %s9, %s7
  %v11 = vstv %s5
  %12 = vst [vmem:[#allocation2] sm:$0x1] %v11
  $region1: #{tpu_custom_call.1} parent=0
    #allocation3 [shape = 'u8[4096]{0}', space=vmem, size = 0x1000, scoped, tag = 'input window, operand 0, single buffered']
    #allocation4 [shape = 's32[1]{0}', space=sflag, size = 0x4, scoped, tag = 'scoped memory for tpu_custom_call.1']
    #allocation5 [shape = 's32[1]{0}', space=sflag, size = 0x4, scoped, tag = 'scoped memory for tpu_custom_call.1']
    #allocation6 [shape = 'u8[16384]{0}', space=vmem, size = 0x4000, scoped, tag = 'input window, operand 2, single buffered']
    #allocation7 [shape = 's32[1]{0}', space=sflag, size = 0x4, scoped, tag = 'scoped memory for tpu_custom_call.1']
    #allocation8 [shape = 'u8[4096]{0}', space=vmem, size = 0x1000, scoped, tag = 'output window, operand 0, single buffered']
    %13 = vsyncpa [#allocation4], 0
    %14 = vsyncpa [#allocation7], 0
    %15 = vsyncpa [#allocation5], 0
    // Predicated region
    $region2: #{tpu_custom_call.1} parent=1 // pred_check
      _
    $region3: #{tpu_custom_call.1} parent=1 // pred_check_branch
      %17 = sbr.rel (0) target = $region5
    $region4: #{tpu_custom_call.1} parent=1 // pred_region
      %s19 = ssub.s32 128, 128
      %20 = vsyncadd [#allocation4], %s19
      %s22 = sshll.u32 [#allocation3], 4
      %s23 = int_to_ptr.vmem [resolvable:$true] %s22
      %25 = dma.hbm_to_vmem [thread:$0]  %s0, 128, %s23, [#allocation4]
    $region5: #{tpu_custom_call.1} parent=1 // pred_fallthru
      _
    // Predicated region
    $region6: #{tpu_custom_call.1} parent=1 // pred_check
      _
    $region7: #{tpu_custom_call.1} parent=1 // pred_check_branch
      %27 = sbr.rel (0) target = $region9
    $region8: #{tpu_custom_call.1} parent=1 // pred_region
      _
    $region9: #{tpu_custom_call.1} parent=1 // pred_fallthru
      _
    // Predicated region
    $region10: #{tpu_custom_call.1} parent=1 // pred_check
      _
    $region11: #{tpu_custom_call.1} parent=1 // pred_check_branch
      %29 = sbr.rel (0) target = $region13
    $region12: #{tpu_custom_call.1} parent=1 // pred_region
      %s31 = ssub.s32 512, 512
      %32 = vsyncadd [#allocation7], %s31
      %s33 = sshll.u32 [#allocation6], 4
      %s34 = int_to_ptr.vmem [resolvable:$true] %s33
      %39 = dma.hbm_to_vmem [thread:$0]  %s2, 512, %s34, [#allocation7], 128, 128, 8
    $region13: #{tpu_custom_call.1} parent=1 // pred_fallthru
      _
    // Predicated region
    $region14: #{tpu_custom_call.1} parent=1 // pred_check
      _
    $region15: #{tpu_custom_call.1} parent=1 // pred_check_branch
      %41 = sbr.rel (0) target = $region17
    $region16: #{tpu_custom_call.1} parent=1 // pred_region
      _
    $region17: #{tpu_custom_call.1} parent=1 // pred_fallthru
      _
    // Predicated region
    $region18: #{tpu_custom_call.1} parent=1 // pred_check
      _
    $region19: #{tpu_custom_call.1} parent=1 // pred_check_branch
      %43 = sbr.rel (0) target = $region21
    $region20: #{tpu_custom_call.1} parent=1 // pred_region
      _
    $region21: #{tpu_custom_call.1} parent=1 // pred_fallthru
      _
    // Predicated region
    $region22: #{tpu_custom_call.1} parent=1 // pred_check
      _
    $region23: #{tpu_custom_call.1} parent=1 // pred_check_branch
      %45 = sbr.rel (0) target = $region25
    $region24: #{tpu_custom_call.1} parent=1 // pred_region
      _
    $region25: #{tpu_custom_call.1} parent=1 // pred_fallthru
      _
    // Predicated region
    $region26: #{tpu_custom_call.1} parent=1 // pred_check
      _
    $region27: #{tpu_custom_call.1} parent=1 // pred_check_branch
      %47 = sbr.rel (0) target = $region29
    $region28: #{tpu_custom_call.1} parent=1 // pred_region
      %48 = dma.done [#allocation4], 128
    $region29: #{tpu_custom_call.1} parent=1 // pred_fallthru
      _
    // Predicated region
    $region30: #{tpu_custom_call.1} parent=1 // pred_check
      _
    $region31: #{tpu_custom_call.1} parent=1 // pred_check_branch
      %50 = sbr.rel (0) target = $region33
    $region32: #{tpu_custom_call.1} parent=1 // pred_region
      %51 = dma.done [#allocation7], 512
    $region33: #{tpu_custom_call.1} parent=1 // pred_fallthru
      _
    %v52 = vld [vmem:[#allocation3] sm:$0xff]
    %v53 = vld [vmem:[%s1] sm:$0x1]
    %v54 = vld [vmem:[#allocation6] sm:$0xff]
    %v55 = vld [vmem:[#allocation6 + $0x8] sm:$0xff]
    %v56 = vld [vmem:[#allocation6 + $0x10] sm:$0xff]
    %v57 = vld [vmem:[#allocation6 + $0x18] sm:$0xff]
    %v58 = vld [vmem:[%s3] sm:$0x1]
    %v59 = vlaneseq
    %v60 = vshrl.u32 %v59, 7
    %v61 = vsub.s32 0, %v60
    %v62 = vrot.slane %v52, %v61
    %64 = vbcast.lane.b32.xlu0 %v62, 256
    %v65 = vpop.permute.xlu0 %64
    %v66 = vlaneseq
    %v67 = vshrl.u32 %v66, 7
    %v68 = vsub.s32 1, %v67
    %v69 = vrot.slane %v52, %v68
    %71 = vbcast.lane.b32.xlu0 %v69, 256
    %v72 = vpop.permute.xlu0 %71
    %v73 = vlaneseq
    %v74 = vshrl.u32 %v73, 7
    %v75 = vsub.s32 2, %v74
    %v76 = vrot.slane %v52, %v75
    %78 = vbcast.lane.b32.xlu0 %v76, 256
    %v79 = vpop.permute.xlu0 %78
    %v80 = vlaneseq
    %v81 = vshrl.u32 %v80, 7
    %v82 = vsub.s32 3, %v81
    %v83 = vrot.slane %v52, %v82
    %85 = vbcast.lane.b32.xlu0 %v83, 256
    %v86 = vpop.permute.xlu0 %85
    %v87 = vlaneseq
    %v88 = vshrl.u32 %v87, 7
    %v89 = vsub.s32 4, %v88
    %v90 = vrot.slane %v52, %v89
    %92 = vbcast.lane.b32.xlu0 %v90, 256
    %v93 = vpop.permute.xlu0 %92
    %v94 = vlaneseq
    %v95 = vshrl.u32 %v94, 7
    %v96 = vsub.s32 5, %v95
    %v97 = vrot.slane %v52, %v96
    %99 = vbcast.lane.b32.xlu0 %v97, 256
    %v100 = vpop.permute.xlu0 %99
    %v101 = vlaneseq
    %v102 = vshrl.u32 %v101, 7
    %v103 = vsub.s32 6, %v102
    %v104 = vrot.slane %v52, %v103
    %106 = vbcast.lane.b32.xlu0 %v104, 256
    %v107 = vpop.permute.xlu0 %106
    %v108 = vlaneseq
    %v109 = vshrl.u32 %v108, 7
    %v110 = vsub.s32 7, %v109
    %v111 = vrot.slane %v52, %v110
    %113 = vbcast.lane.b32.xlu0 %v111, 256
    %v114 = vpop.permute.xlu0 %113
    %v116 = vlaneseq
    %v117 = vshrl.u32 %v116, 7
    %v118 = vsub.s32 0, %v117
    %v119 = vrot.slane %v53, %v118
    %v121 = vmul.f32 %v65, %v119
    %v122 = vmul.f32 %v72, %v119
    %v123 = vmul.f32 %v79, %v119
    %v124 = vmul.f32 %v86, %v119
    %v125 = vmul.f32 %v93, %v119
    %v126 = vmul.f32 %v100, %v119
    %v127 = vmul.f32 %v107, %v119
    %v128 = vmul.f32 %v114, %v119
    %v130 = vlaneseq
    %v131 = vshrl.u32 %v130, 7
    %v132 = vsub.s32 0, %v131
    %v133 = vrot.slane %v58, %v132
    %v135 = vadd.f32 %v121, %v133
    %v136 = vadd.f32 %v122, %v133
    %v137 = vadd.f32 %v123, %v133
    %v138 = vadd.f32 %v124, %v133
    %v139 = vadd.f32 %v125, %v133
    %v140 = vadd.f32 %v126, %v133
    %v141 = vadd.f32 %v127, %v133
    %v142 = vadd.f32 %v128, %v133
    %v143 = vlaneseq
    %v144 = vand.u32 %v143, 127
    %vm145 = vcmp.ge.s32.totalorder %v144, 64
    %vm146 = vcmp.lt.s32.totalorder %v144, 96
    %vm147 = vmand %vm145, %vm146
    %vm148 = vcmask 261120
    %v150 = vsel %vm148, 0.0, 0
    %152 = vmatprep.subr.mxu0 0.0
    %153 = vmatpush1.msra.mxu0 0.0
    %154 = vmatprep.subr.mxu0 0.0
    %155 = vmatpush1.msra.mxu0 0.0
    %156 = vmatprep.subr.mxu0 0.0
    %157 = vmatpush1.msra.mxu0 0.0
    %158 = vmatprep.subr.mxu0 0.0
    %159 = vmatpush1.msra.mxu0 0.0
    %160 = vmatprep.subr.mxu0 0.0
    %161 = vmatpush1.msra.mxu0 0.0
    %162 = vmatprep.subr.mxu0 0.0
    %163 = vmatpush1.msra.mxu0 0.0
    %164 = vmatprep.subr.mxu0 0.0
    %165 = vmatpush1.msra.mxu0 0.0
    %166 = vmatprep.subr.mxu0 0.0
    %167 = vmatpush1.msra.mxu0 0.0
    %168 = vmatprep.subr.mxu0 0.0
    %169 = vmatpush1.msra.mxu0 0.0
    %170 = vmatprep.subr.mxu0 0.0
    %171 = vmatpush1.msra.mxu0 0.0
    %172 = vmatprep.subr.mxu0 0.0
    %173 = vmatpush1.msra.mxu0 0.0
    %174 = vmatprep.subr.mxu0 0.0
    %175 = vmatpush1.msra.mxu0 0.0
    %176 = vmatprep.subr.mxu0 0.0
    %177 = vmatpush1.msra.mxu0 %v57
    %178 = vmatprep.subr.mxu0 0.0
    %179 = vmatpush1.msra.mxu0 %v56
    %180 = vmatprep.subr.mxu0 0.0
    %181 = vmatpush1.msra.mxu0 %v55
    %182 = vmatprep.subr.mxu0 0.0
    %183 = vmatpush1.msra.mxu0 %v54
    %184 = vmatprep.subr.mxu0 0.0
    %185 = vmatpush2.msra.mxu0 0.0
    %186 = vmatprep.subr.mxu0 0.0
    %187 = vmatpush2.msra.mxu0 0.0
    %188 = vmatprep.subr.mxu0 0.0
    %189 = vmatpush2.msra.mxu0 0.0
    %190 = vmatprep.subr.mxu0 0.0
    %191 = vmatpush2.msra.mxu0 0.0
    %192 = vmatprep.subr.mxu0 0.0
    %193 = vmatpush2.msra.mxu0 0.0
    %194 = vmatprep.subr.mxu0 0.0
    %195 = vmatpush2.msra.mxu0 0.0
    %196 = vmatprep.subr.mxu0 0.0
    %197 = vmatpush2.msra.mxu0 0.0
    %198 = vmatprep.subr.mxu0 0.0
    %199 = vmatpush2.msra.mxu0 0.0
    %200 = vmatprep.subr.mxu0 0.0
    %201 = vmatpush2.msra.mxu0 0.0
    %202 = vmatprep.subr.mxu0 0.0
    %203 = vmatpush2.msra.mxu0 0.0
    %204 = vmatprep.subr.mxu0 0.0
    %205 = vmatpush2.msra.mxu0 0.0
    %206 = vmatprep.subr.mxu0 0.0
    %207 = vmatpush2.msra.mxu0 0.0
    %208 = vmatprep.subr.mxu0 0.0
    %209 = vmatpush2.msra.mxu0 0.0
    %210 = vmatprep.subr.mxu0 0.0
    %211 = vmatpush2.msra.mxu0 0.0
    %212 = vmatprep.subr.mxu0 0.0
    %213 = vmatpush2.msra.mxu0 0.0
    %214 = vmatprep.subr.mxu0 0.0
    %215 = vmatpush2.msra.mxu0 0.0
    %216 = vmatprep.mubr.f32.mxu0 0.0
    %217 = vmatmul.mubr.f32.gmra.mxu0 %v150
    %v218 = vpop.f32.mrf.mxu0
    %v219 = vadd.f32 0.0, %v218
    %v220 = vpop.f32.mrf.mxu0
    %221 = vdwg.mxu0
    %v222 = vadd.f32 %v135, %v219
    %v223 = vsub.f32 0.0, %v222
    %v224 = vmul.f32 %v223, 1.442695
    %v225 = vpow.pop %v224
    %v226 = vadd.f32 %v225, 1.0
    %v227 = vrcp.pop %v226
    %v228 = vmul.f32 1.0, %v227
    %v229 = vtanh.pop %v222
    %v230 = vsel %vm147, %v229, %v228
    %v231 = vmul.f32 %v230, 0.0
    %233 = vrot.lane.b32.xlu0 %v230, 64
    %v234 = vpop.permute.xlu0 %233
    %v236 = vmul.f32 %v230, %v234
    %238 = vrot.lane.b32.xlu0 %v236, 32
    %v239 = vpop.permute.xlu0 %238
    %v241 = vadd.f32 %v231, %v239
    %v242 = vtanh.pop %v241
    %244 = vrot.lane.b32.xlu0 %v242, 64
    %v245 = vpop.permute.xlu0 %244
    %v247 = vmul.f32 %v230, %v245
    %249 = vrot.lane.b32.xlu0 %v247, 32
    %v250 = vpop.permute.xlu0 %249
    %v251 = vsel %vm148, %v250, 0
    %253 = vmatprep.subr.mxu0 0.0
    %254 = vmatpush1.msra.mxu0 0.0
    %255 = vmatprep.subr.mxu0 0.0
    %256 = vmatpush1.msra.mxu0 0.0
    %257 = vmatprep.subr.mxu0 0.0
    %258 = vmatpush1.msra.mxu0 0.0
    %259 = vmatprep.subr.mxu0 0.0
    %260 = vmatpush1.msra.mxu0 0.0
    %261 = vmatprep.subr.mxu0 0.0
    %262 = vmatpush1.msra.mxu0 0.0
    %263 = vmatprep.subr.mxu0 0.0
    %264 = vmatpush1.msra.mxu0 0.0
    %265 = vmatprep.subr.mxu0 0.0
    %266 = vmatpush1.msra.mxu0 0.0
    %267 = vmatprep.subr.mxu0 0.0
    %268 = vmatpush1.msra.mxu0 0.0
    %269 = vmatprep.subr.mxu0 0.0
    %270 = vmatpush1.msra.mxu0 0.0
    %271 = vmatprep.subr.mxu0 0.0
    %272 = vmatpush1.msra.mxu0 0.0
    %273 = vmatprep.subr.mxu0 0.0
    %274 = vmatpush1.msra.mxu0 0.0
    %275 = vmatprep.subr.mxu0 0.0
    %276 = vmatpush1.msra.mxu0 0.0
    %277 = vmatprep.subr.mxu0 0.0
    %278 = vmatpush1.msra.mxu0 %v57
    %279 = vmatprep.subr.mxu0 0.0
    %280 = vmatpush1.msra.mxu0 %v56
    %281 = vmatprep.subr.mxu0 0.0
    %282 = vmatpush1.msra.mxu0 %v55
    %283 = vmatprep.subr.mxu0 0.0
    %284 = vmatpush1.msra.mxu0 %v54
    %285 = vmatprep.subr.mxu0 0.0
    %286 = vmatpush2.msra.mxu0 0.0
    %287 = vmatprep.subr.mxu0 0.0
    %288 = vmatpush2.msra.mxu0 0.0
    %289 = vmatprep.subr.mxu0 0.0
    %290 = vmatpush2.msra.mxu0 0.0
    %291 = vmatprep.subr.mxu0 0.0
    %292 = vmatpush2.msra.mxu0 0.0
    %293 = vmatprep.subr.mxu0 0.0
    %294 = vmatpush2.msra.mxu0 0.0
    %295 = vmatprep.subr.mxu0 0.0
    %296 = vmatpush2.msra.mxu0 0.0
    %297 = vmatprep.subr.mxu0 0.0
    %298 = vmatpush2.msra.mxu0 0.0
    %299 = vmatprep.subr.mxu0 0.0
    %300 = vmatpush2.msra.mxu0 0.0
    %301 = vmatprep.subr.mxu0 0.0
    %302 = vmatpush2.msra.mxu0 0.0
    %303 = vmatprep.subr.mxu0 0.0
    %304 = vmatpush2.msra.mxu0 0.0
    %305 = vmatprep.subr.mxu0 0.0
    %306 = vmatpush2.msra.mxu0 0.0
    %307 = vmatprep.subr.mxu0 0.0
    %308 = vmatpush2.msra.mxu0 0.0
    %309 = vmatprep.subr.mxu0 0.0
    %310 = vmatpush2.msra.mxu0 0.0
    %311 = vmatprep.subr.mxu0 0.0
    %312 = vmatpush2.msra.mxu0 0.0
    %313 = vmatprep.subr.mxu0 0.0
    %314 = vmatpush2.msra.mxu0 0.0
    %315 = vmatprep.subr.mxu0 0.0
    %316 = vmatpush2.msra.mxu0 0.0
    %317 = vmatprep.mubr.f32.mxu0 0.0
    %318 = vmatmul.mubr.f32.gmra.mxu0 %v251
    %v319 = vpop.f32.mrf.mxu0
    %v320 = vadd.f32 0.0, %v319
    %v321 = vpop.f32.mrf.mxu0
    %322 = vdwg.mxu0
    %v323 = vadd.f32 %v136, %v320
    %v324 = vsub.f32 0.0, %v323
    %v325 = vmul.f32 %v324, 1.442695
    %v326 = vpow.pop %v325
    %v327 = vadd.f32 %v326, 1.0
    %v328 = vrcp.pop %v327
    %v329 = vmul.f32 1.0, %v328
    %v330 = vtanh.pop %v323
    %v331 = vsel %vm147, %v330, %v329
    %v332 = vmul.f32 %v331, %v241
    %334 = vrot.lane.b32.xlu0 %v331, 64
    %v335 = vpop.permute.xlu0 %334
    %v337 = vmul.f32 %v331, %v335
    %339 = vrot.lane.b32.xlu0 %v337, 32
    %v340 = vpop.permute.xlu0 %339
    %v342 = vadd.f32 %v332, %v340
    %v343 = vtanh.pop %v342
    %345 = vrot.lane.b32.xlu0 %v343, 64
    %v346 = vpop.permute.xlu0 %345
    %v348 = vmul.f32 %v331, %v346
    %350 = vrot.lane.b32.xlu0 %v348, 32
    %v351 = vpop.permute.xlu0 %350
    %v352 = vsel %vm148, %v351, 0
    %354 = vmatprep.subr.mxu0 0.0
    %355 = vmatpush1.msra.mxu0 0.0
    %356 = vmatprep.subr.mxu0 0.0
    %357 = vmatpush1.msra.mxu0 0.0
    %358 = vmatprep.subr.mxu0 0.0
    %359 = vmatpush1.msra.mxu0 0.0
    %360 = vmatprep.subr.mxu0 0.0
    %361 = vmatpush1.msra.mxu0 0.0
    %362 = vmatprep.subr.mxu0 0.0
    %363 = vmatpush1.msra.mxu0 0.0
    %364 = vmatprep.subr.mxu0 0.0
    %365 = vmatpush1.msra.mxu0 0.0
    %366 = vmatprep.subr.mxu0 0.0
    %367 = vmatpush1.msra.mxu0 0.0
    %368 = vmatprep.subr.mxu0 0.0
    %369 = vmatpush1.msra.mxu0 0.0
    %370 = vmatprep.subr.mxu0 0.0
    %371 = vmatpush1.msra.mxu0 0.0
    %372 = vmatprep.subr.mxu0 0.0
    %373 = vmatpush1.msra.mxu0 0.0
    %374 = vmatprep.subr.mxu0 0.0
    %375 = vmatpush1.msra.mxu0 0.0
    %376 = vmatprep.subr.mxu0 0.0
    %377 = vmatpush1.msra.mxu0 0.0
    %378 = vmatprep.subr.mxu0 0.0
    %379 = vmatpush1.msra.mxu0 %v57
    %380 = vmatprep.subr.mxu0 0.0
    %381 = vmatpush1.msra.mxu0 %v56
    %382 = vmatprep.subr.mxu0 0.0
    %383 = vmatpush1.msra.mxu0 %v55
    %384 = vmatprep.subr.mxu0 0.0
    %385 = vmatpush1.msra.mxu0 %v54
    %386 = vmatprep.subr.mxu0 0.0
    %387 = vmatpush2.msra.mxu0 0.0
    %388 = vmatprep.subr.mxu0 0.0
    %389 = vmatpush2.msra.mxu0 0.0
    %390 = vmatprep.subr.mxu0 0.0
    %391 = vmatpush2.msra.mxu0 0.0
    %392 = vmatprep.subr.mxu0 0.0
    %393 = vmatpush2.msra.mxu0 0.0
    %394 = vmatprep.subr.mxu0 0.0
    %395 = vmatpush2.msra.mxu0 0.0
    %396 = vmatprep.subr.mxu0 0.0
    %397 = vmatpush2.msra.mxu0 0.0
    %398 = vmatprep.subr.mxu0 0.0
    %399 = vmatpush2.msra.mxu0 0.0
    %400 = vmatprep.subr.mxu0 0.0
    %401 = vmatpush2.msra.mxu0 0.0
    %402 = vmatprep.subr.mxu0 0.0
    %403 = vmatpush2.msra.mxu0 0.0
    %404 = vmatprep.subr.mxu0 0.0
    %405 = vmatpush2.msra.mxu0 0.0
    %406 = vmatprep.subr.mxu0 0.0
    %407 = vmatpush2.msra.mxu0 0.0
    %408 = vmatprep.subr.mxu0 0.0
    %409 = vmatpush2.msra.mxu0 0.0
    %410 = vmatprep.subr.mxu0 0.0
    %411 = vmatpush2.msra.mxu0 0.0
    %412 = vmatprep.subr.mxu0 0.0
    %413 = vmatpush2.msra.mxu0 0.0
    %414 = vmatprep.subr.mxu0 0.0
    %415 = vmatpush2.msra.mxu0 0.0
    %416 = vmatprep.subr.mxu0 0.0
    %417 = vmatpush2.msra.mxu0 0.0
    %418 = vmatprep.mubr.f32.mxu0 0.0
    %419 = vmatmul.mubr.f32.gmra.mxu0 %v352
    %v420 = vpop.f32.mrf.mxu0
    %v421 = vadd.f32 0.0, %v420
    %v422 = vpop.f32.mrf.mxu0
    %423 = vdwg.mxu0
    %v424 = vadd.f32 %v137, %v421
    %v425 = vsub.f32 0.0, %v424
    %v426 = vmul.f32 %v425, 1.442695
    %v427 = vpow.pop %v426
    %v428 = vadd.f32 %v427, 1.0
    %v429 = vrcp.pop %v428
    %v430 = vmul.f32 1.0, %v429
    %v431 = vtanh.pop %v424
    %v432 = vsel %vm147, %v431, %v430
    %v433 = vmul.f32 %v432, %v342
    %435 = vrot.lane.b32.xlu0 %v432, 64
    %v436 = vpop.permute.xlu0 %435
    %v438 = vmul.f32 %v432, %v436
    %440 = vrot.lane.b32.xlu0 %v438, 32
    %v441 = vpop.permute.xlu0 %440
    %v443 = vadd.f32 %v433, %v441
    %v444 = vtanh.pop %v443
    %446 = vrot.lane.b32.xlu0 %v444, 64
    %v447 = vpop.permute.xlu0 %446
    %v449 = vmul.f32 %v432, %v447
    %451 = vrot.lane.b32.xlu0 %v449, 32
    %v452 = vpop.permute.xlu0 %451
    %v453 = vsel %vm148, %v452, 0
    %455 = vmatprep.subr.mxu0 0.0
    %456 = vmatpush1.msra.mxu0 0.0
    %457 = vmatprep.subr.mxu0 0.0
    %458 = vmatpush1.msra.mxu0 0.0
    %459 = vmatprep.subr.mxu0 0.0
    %460 = vmatpush1.msra.mxu0 0.0
    %461 = vmatprep.subr.mxu0 0.0
    %462 = vmatpush1.msra.mxu0 0.0
    %463 = vmatprep.subr.mxu0 0.0
    %464 = vmatpush1.msra.mxu0 0.0
    %465 = vmatprep.subr.mxu0 0.0
    %466 = vmatpush1.msra.mxu0 0.0
    %467 = vmatprep.subr.mxu0 0.0
    %468 = vmatpush1.msra.mxu0 0.0
    %469 = vmatprep.subr.mxu0 0.0
    %470 = vmatpush1.msra.mxu0 0.0
    %471 = vmatprep.subr.mxu0 0.0
    %472 = vmatpush1.msra.mxu0 0.0
    %473 = vmatprep.subr.mxu0 0.0
    %474 = vmatpush1.msra.mxu0 0.0
    %475 = vmatprep.subr.mxu0 0.0
    %476 = vmatpush1.msra.mxu0 0.0
    %477 = vmatprep.subr.mxu0 0.0
    %478 = vmatpush1.msra.mxu0 0.0
    %479 = vmatprep.subr.mxu0 0.0
    %480 = vmatpush1.msra.mxu0 %v57
    %481 = vmatprep.subr.mxu0 0.0
    %482 = vmatpush1.msra.mxu0 %v56
    %483 = vmatprep.subr.mxu0 0.0
    %484 = vmatpush1.msra.mxu0 %v55
    %485 = vmatprep.subr.mxu0 0.0
    %486 = vmatpush1.msra.mxu0 %v54
    %487 = vmatprep.subr.mxu0 0.0
    %488 = vmatpush2.msra.mxu0 0.0
    %489 = vmatprep.subr.mxu0 0.0
    %490 = vmatpush2.msra.mxu0 0.0
    %491 = vmatprep.subr.mxu0 0.0
    %492 = vmatpush2.msra.mxu0 0.0
    %493 = vmatprep.subr.mxu0 0.0
    %494 = vmatpush2.msra.mxu0 0.0
    %495 = vmatprep.subr.mxu0 0.0
    %496 = vmatpush2.msra.mxu0 0.0
    %497 = vmatprep.subr.mxu0 0.0
    %498 = vmatpush2.msra.mxu0 0.0
    %499 = vmatprep.subr.mxu0 0.0
    %500 = vmatpush2.msra.mxu0 0.0
    %501 = vmatprep.subr.mxu0 0.0
    %502 = vmatpush2.msra.mxu0 0.0
    %503 = vmatprep.subr.mxu0 0.0
    %504 = vmatpush2.msra.mxu0 0.0
    %505 = vmatprep.subr.mxu0 0.0
    %506 = vmatpush2.msra.mxu0 0.0
    %507 = vmatprep.subr.mxu0 0.0
    %508 = vmatpush2.msra.mxu0 0.0
    %509 = vmatprep.subr.mxu0 0.0
    %510 = vmatpush2.msra.mxu0 0.0
    %511 = vmatprep.subr.mxu0 0.0
    %512 = vmatpush2.msra.mxu0 0.0
    %513 = vmatprep.subr.mxu0 0.0
    %514 = vmatpush2.msra.mxu0 0.0
    %515 = vmatprep.subr.mxu0 0.0
    %516 = vmatpush2.msra.mxu0 0.0
    %517 = vmatprep.subr.mxu0 0.0
    %518 = vmatpush2.msra.mxu0 0.0
    %519 = vmatprep.mubr.f32.mxu0 0.0
    %520 = vmatmul.mubr.f32.gmra.mxu0 %v453
    %v521 = vpop.f32.mrf.mxu0
    %v522 = vadd.f32 0.0, %v521
    %v523 = vpop.f32.mrf.mxu0
    %524 = vdwg.mxu0
    %v525 = vadd.f32 %v138, %v522
    %v526 = vsub.f32 0.0, %v525
    %v527 = vmul.f32 %v526, 1.442695
    %v528 = vpow.pop %v527
    %v529 = vadd.f32 %v528, 1.0
    %v530 = vrcp.pop %v529
    %v531 = vmul.f32 1.0, %v530
    %v532 = vtanh.pop %v525
    %v533 = vsel %vm147, %v532, %v531
    %v534 = vmul.f32 %v533, %v443
    %536 = vrot.lane.b32.xlu0 %v533, 64
    %v537 = vpop.permute.xlu0 %536
    %v539 = vmul.f32 %v533, %v537
    %541 = vrot.lane.b32.xlu0 %v539, 32
    %v542 = vpop.permute.xlu0 %541
    %v544 = vadd.f32 %v534, %v542
    %v545 = vtanh.pop %v544
    %547 = vrot.lane.b32.xlu0 %v545, 64
    %v548 = vpop.permute.xlu0 %547
    %v550 = vmul.f32 %v533, %v548
    %552 = vrot.lane.b32.xlu0 %v550, 32
    %v553 = vpop.permute.xlu0 %552
    %v554 = vsel %vm148, %v553, 0
    %556 = vmatprep.subr.mxu0 0.0
    %557 = vmatpush1.msra.mxu0 0.0
    %558 = vmatprep.subr.mxu0 0.0
    %559 = vmatpush1.msra.mxu0 0.0
    %560 = vmatprep.subr.mxu0 0.0
    %561 = vmatpush1.msra.mxu0 0.0
    %562 = vmatprep.subr.mxu0 0.0
    %563 = vmatpush1.msra.mxu0 0.0
    %564 = vmatprep.subr.mxu0 0.0
    %565 = vmatpush1.msra.mxu0 0.0
    %566 = vmatprep.subr.mxu0 0.0
    %567 = vmatpush1.msra.mxu0 0.0
    %568 = vmatprep.subr.mxu0 0.0
    %569 = vmatpush1.msra.mxu0 0.0
    %570 = vmatprep.subr.mxu0 0.0
    %571 = vmatpush1.msra.mxu0 0.0
    %572 = vmatprep.subr.mxu0 0.0
    %573 = vmatpush1.msra.mxu0 0.0
    %574 = vmatprep.subr.mxu0 0.0
    %575 = vmatpush1.msra.mxu0 0.0
    %576 = vmatprep.subr.mxu0 0.0
    %577 = vmatpush1.msra.mxu0 0.0
    %578 = vmatprep.subr.mxu0 0.0
    %579 = vmatpush1.msra.mxu0 0.0
    %580 = vmatprep.subr.mxu0 0.0
    %581 = vmatpush1.msra.mxu0 %v57
    %582 = vmatprep.subr.mxu0 0.0
    %583 = vmatpush1.msra.mxu0 %v56
    %584 = vmatprep.subr.mxu0 0.0
    %585 = vmatpush1.msra.mxu0 %v55
    %586 = vmatprep.subr.mxu0 0.0
    %587 = vmatpush1.msra.mxu0 %v54
    %588 = vmatprep.subr.mxu0 0.0
    %589 = vmatpush2.msra.mxu0 0.0
    %590 = vmatprep.subr.mxu0 0.0
    %591 = vmatpush2.msra.mxu0 0.0
    %592 = vmatprep.subr.mxu0 0.0
    %593 = vmatpush2.msra.mxu0 0.0
    %594 = vmatprep.subr.mxu0 0.0
    %595 = vmatpush2.msra.mxu0 0.0
    %596 = vmatprep.subr.mxu0 0.0
    %597 = vmatpush2.msra.mxu0 0.0
    %598 = vmatprep.subr.mxu0 0.0
    %599 = vmatpush2.msra.mxu0 0.0
    %600 = vmatprep.subr.mxu0 0.0
    %601 = vmatpush2.msra.mxu0 0.0
    %602 = vmatprep.subr.mxu0 0.0
    %603 = vmatpush2.msra.mxu0 0.0
    %604 = vmatprep.subr.mxu0 0.0
    %605 = vmatpush2.msra.mxu0 0.0
    %606 = vmatprep.subr.mxu0 0.0
    %607 = vmatpush2.msra.mxu0 0.0
    %608 = vmatprep.subr.mxu0 0.0
    %609 = vmatpush2.msra.mxu0 0.0
    %610 = vmatprep.subr.mxu0 0.0
    %611 = vmatpush2.msra.mxu0 0.0
    %612 = vmatprep.subr.mxu0 0.0
    %613 = vmatpush2.msra.mxu0 0.0
    %614 = vmatprep.subr.mxu0 0.0
    %615 = vmatpush2.msra.mxu0 0.0
    %616 = vmatprep.subr.mxu0 0.0
    %617 = vmatpush2.msra.mxu0 0.0
    %618 = vmatprep.subr.mxu0 0.0
    %619 = vmatpush2.msra.mxu0 0.0
    %620 = vmatprep.mubr.f32.mxu0 0.0
    %621 = vmatmul.mubr.f32.gmra.mxu0 %v554
    %v622 = vpop.f32.mrf.mxu0
    %v623 = vadd.f32 0.0, %v622
    %v624 = vpop.f32.mrf.mxu0
    %625 = vdwg.mxu0
    %v626 = vadd.f32 %v139, %v623
    %v627 = vsub.f32 0.0, %v626
    %v628 = vmul.f32 %v627, 1.442695
    %v629 = vpow.pop %v628
    %v630 = vadd.f32 %v629, 1.0
    %v631 = vrcp.pop %v630
    %v632 = vmul.f32 1.0, %v631
    %v633 = vtanh.pop %v626
    %v634 = vsel %vm147, %v633, %v632
    %v635 = vmul.f32 %v634, %v544
    %637 = vrot.lane.b32.xlu0 %v634, 64
    %v638 = vpop.permute.xlu0 %637
    %v640 = vmul.f32 %v634, %v638
    %642 = vrot.lane.b32.xlu0 %v640, 32
    %v643 = vpop.permute.xlu0 %642
    %v645 = vadd.f32 %v635, %v643
    %v646 = vtanh.pop %v645
    %648 = vrot.lane.b32.xlu0 %v646, 64
    %v649 = vpop.permute.xlu0 %648
    %v651 = vmul.f32 %v634, %v649
    %653 = vrot.lane.b32.xlu0 %v651, 32
    %v654 = vpop.permute.xlu0 %653
    %v655 = vsel %vm148, %v654, 0
    %657 = vmatprep.subr.mxu0 0.0
    %658 = vmatpush1.msra.mxu0 0.0
    %659 = vmatprep.subr.mxu0 0.0
    %660 = vmatpush1.msra.mxu0 0.0
    %661 = vmatprep.subr.mxu0 0.0
    %662 = vmatpush1.msra.mxu0 0.0
    %663 = vmatprep.subr.mxu0 0.0
    %664 = vmatpush1.msra.mxu0 0.0
    %665 = vmatprep.subr.mxu0 0.0
    %666 = vmatpush1.msra.mxu0 0.0
    %667 = vmatprep.subr.mxu0 0.0
    %668 = vmatpush1.msra.mxu0 0.0
    %669 = vmatprep.subr.mxu0 0.0
    %670 = vmatpush1.msra.mxu0 0.0
    %671 = vmatprep.subr.mxu0 0.0
    %672 = vmatpush1.msra.mxu0 0.0
    %673 = vmatprep.subr.mxu0 0.0
    %674 = vmatpush1.msra.mxu0 0.0
    %675 = vmatprep.subr.mxu0 0.0
    %676 = vmatpush1.msra.mxu0 0.0
    %677 = vmatprep.subr.mxu0 0.0
    %678 = vmatpush1.msra.mxu0 0.0
    %679 = vmatprep.subr.mxu0 0.0
    %680 = vmatpush1.msra.mxu0 0.0
    %681 = vmatprep.subr.mxu0 0.0
    %682 = vmatpush1.msra.mxu0 %v57
    %683 = vmatprep.subr.mxu0 0.0
    %684 = vmatpush1.msra.mxu0 %v56
    %685 = vmatprep.subr.mxu0 0.0
    %686 = vmatpush1.msra.mxu0 %v55
    %687 = vmatprep.subr.mxu0 0.0
    %688 = vmatpush1.msra.mxu0 %v54
    %689 = vmatprep.subr.mxu0 0.0
    %690 = vmatpush2.msra.mxu0 0.0
    %691 = vmatprep.subr.mxu0 0.0
    %692 = vmatpush2.msra.mxu0 0.0
    %693 = vmatprep.subr.mxu0 0.0
    %694 = vmatpush2.msra.mxu0 0.0
    %695 = vmatprep.subr.mxu0 0.0
    %696 = vmatpush2.msra.mxu0 0.0
    %697 = vmatprep.subr.mxu0 0.0
    %698 = vmatpush2.msra.mxu0 0.0
    %699 = vmatprep.subr.mxu0 0.0
    %700 = vmatpush2.msra.mxu0 0.0
    %701 = vmatprep.subr.mxu0 0.0
    %702 = vmatpush2.msra.mxu0 0.0
    %703 = vmatprep.subr.mxu0 0.0
    %704 = vmatpush2.msra.mxu0 0.0
    %705 = vmatprep.subr.mxu0 0.0
    %706 = vmatpush2.msra.mxu0 0.0
    %707 = vmatprep.subr.mxu0 0.0
    %708 = vmatpush2.msra.mxu0 0.0
    %709 = vmatprep.subr.mxu0 0.0
    %710 = vmatpush2.msra.mxu0 0.0
    %711 = vmatprep.subr.mxu0 0.0
    %712 = vmatpush2.msra.mxu0 0.0
    %713 = vmatprep.subr.mxu0 0.0
    %714 = vmatpush2.msra.mxu0 0.0
    %715 = vmatprep.subr.mxu0 0.0
    %716 = vmatpush2.msra.mxu0 0.0
    %717 = vmatprep.subr.mxu0 0.0
    %718 = vmatpush2.msra.mxu0 0.0
    %719 = vmatprep.subr.mxu0 0.0
    %720 = vmatpush2.msra.mxu0 0.0
    %721 = vmatprep.mubr.f32.mxu0 0.0
    %722 = vmatmul.mubr.f32.gmra.mxu0 %v655
    %v723 = vpop.f32.mrf.mxu0
    %v724 = vadd.f32 0.0, %v723
    %v725 = vpop.f32.mrf.mxu0
    %726 = vdwg.mxu0
    %v727 = vadd.f32 %v140, %v724
    %v728 = vsub.f32 0.0, %v727
    %v729 = vmul.f32 %v728, 1.442695
    %v730 = vpow.pop %v729
    %v731 = vadd.f32 %v730, 1.0
    %v732 = vrcp.pop %v731
    %v733 = vmul.f32 1.0, %v732
    %v734 = vtanh.pop %v727
    %v735 = vsel %vm147, %v734, %v733
    %v736 = vmul.f32 %v735, %v645
    %738 = vrot.lane.b32.xlu0 %v735, 64
    %v739 = vpop.permute.xlu0 %738
    %v741 = vmul.f32 %v735, %v739
    %743 = vrot.lane.b32.xlu0 %v741, 32
    %v744 = vpop.permute.xlu0 %743
    %v746 = vadd.f32 %v736, %v744
    %v747 = vtanh.pop %v746
    %749 = vrot.lane.b32.xlu0 %v747, 64
    %v750 = vpop.permute.xlu0 %749
    %v752 = vmul.f32 %v735, %v750
    %754 = vrot.lane.b32.xlu0 %v752, 32
    %v755 = vpop.permute.xlu0 %754
    %v756 = vsel %vm148, %v755, 0
    %758 = vmatprep.subr.mxu0 0.0
    %759 = vmatpush1.msra.mxu0 0.0
    %760 = vmatprep.subr.mxu0 0.0
    %761 = vmatpush1.msra.mxu0 0.0
    %762 = vmatprep.subr.mxu0 0.0
    %763 = vmatpush1.msra.mxu0 0.0
    %764 = vmatprep.subr.mxu0 0.0
    %765 = vmatpush1.msra.mxu0 0.0
    %766 = vmatprep.subr.mxu0 0.0
    %767 = vmatpush1.msra.mxu0 0.0
    %768 = vmatprep.subr.mxu0 0.0
    %769 = vmatpush1.msra.mxu0 0.0
    %770 = vmatprep.subr.mxu0 0.0
    %771 = vmatpush1.msra.mxu0 0.0
    %772 = vmatprep.subr.mxu0 0.0
    %773 = vmatpush1.msra.mxu0 0.0
    %774 = vmatprep.subr.mxu0 0.0
    %775 = vmatpush1.msra.mxu0 0.0
    %776 = vmatprep.subr.mxu0 0.0
    %777 = vmatpush1.msra.mxu0 0.0
    %778 = vmatprep.subr.mxu0 0.0
    %779 = vmatpush1.msra.mxu0 0.0
    %780 = vmatprep.subr.mxu0 0.0
    %781 = vmatpush1.msra.mxu0 0.0
    %782 = vmatprep.subr.mxu0 0.0
    %783 = vmatpush1.msra.mxu0 %v57
    %784 = vmatprep.subr.mxu0 0.0
    %785 = vmatpush1.msra.mxu0 %v56
    %786 = vmatprep.subr.mxu0 0.0
    %787 = vmatpush1.msra.mxu0 %v55
    %788 = vmatprep.subr.mxu0 0.0
    %789 = vmatpush1.msra.mxu0 %v54
    %790 = vmatprep.subr.mxu0 0.0
    %791 = vmatpush2.msra.mxu0 0.0
    %792 = vmatprep.subr.mxu0 0.0
    %793 = vmatpush2.msra.mxu0 0.0
    %794 = vmatprep.subr.mxu0 0.0
    %795 = vmatpush2.msra.mxu0 0.0
    %796 = vmatprep.subr.mxu0 0.0
    %797 = vmatpush2.msra.mxu0 0.0
    %798 = vmatprep.subr.mxu0 0.0
    %799 = vmatpush2.msra.mxu0 0.0
    %800 = vmatprep.subr.mxu0 0.0
    %801 = vmatpush2.msra.mxu0 0.0
    %802 = vmatprep.subr.mxu0 0.0
    %803 = vmatpush2.msra.mxu0 0.0
    %804 = vmatprep.subr.mxu0 0.0
    %805 = vmatpush2.msra.mxu0 0.0
    %806 = vmatprep.subr.mxu0 0.0
    %807 = vmatpush2.msra.mxu0 0.0
    %808 = vmatprep.subr.mxu0 0.0
    %809 = vmatpush2.msra.mxu0 0.0
    %810 = vmatprep.subr.mxu0 0.0
    %811 = vmatpush2.msra.mxu0 0.0
    %812 = vmatprep.subr.mxu0 0.0
    %813 = vmatpush2.msra.mxu0 0.0
    %814 = vmatprep.subr.mxu0 0.0
    %815 = vmatpush2.msra.mxu0 0.0
    %816 = vmatprep.subr.mxu0 0.0
    %817 = vmatpush2.msra.mxu0 0.0
    %818 = vmatprep.subr.mxu0 0.0
    %819 = vmatpush2.msra.mxu0 0.0
    %820 = vmatprep.subr.mxu0 0.0
    %821 = vmatpush2.msra.mxu0 0.0
    %822 = vmatprep.mubr.f32.mxu0 0.0
    %823 = vmatmul.mubr.f32.gmra.mxu0 %v756
    %v824 = vpop.f32.mrf.mxu0
    %v825 = vadd.f32 0.0, %v824
    %v826 = vpop.f32.mrf.mxu0
    %827 = vdwg.mxu0
    %v828 = vadd.f32 %v141, %v825
    %v829 = vsub.f32 0.0, %v828
    %v830 = vmul.f32 %v829, 1.442695
    %v831 = vpow.pop %v830
    %v832 = vadd.f32 %v831, 1.0
    %v833 = vrcp.pop %v832
    %v834 = vmul.f32 1.0, %v833
    %v835 = vtanh.pop %v828
    %v836 = vsel %vm147, %v835, %v834
    %v837 = vmul.f32 %v836, %v746
    %839 = vrot.lane.b32.xlu0 %v836, 64
    %v840 = vpop.permute.xlu0 %839
    %v842 = vmul.f32 %v836, %v840
    %844 = vrot.lane.b32.xlu0 %v842, 32
    %v845 = vpop.permute.xlu0 %844
    %v847 = vadd.f32 %v837, %v845
    %v848 = vtanh.pop %v847
    %850 = vrot.lane.b32.xlu0 %v848, 64
    %v851 = vpop.permute.xlu0 %850
    %v853 = vmul.f32 %v836, %v851
    %855 = vrot.lane.b32.xlu0 %v853, 32
    %v856 = vpop.permute.xlu0 %855
    %v857 = vsel %vm148, %v856, 0
    %859 = vmatprep.subr.mxu0 0.0
    %860 = vmatpush1.msra.mxu0 0.0
    %861 = vmatprep.subr.mxu0 0.0
    %862 = vmatpush1.msra.mxu0 0.0
    %863 = vmatprep.subr.mxu0 0.0
    %864 = vmatpush1.msra.mxu0 0.0
    %865 = vmatprep.subr.mxu0 0.0
    %866 = vmatpush1.msra.mxu0 0.0
    %867 = vmatprep.subr.mxu0 0.0
    %868 = vmatpush1.msra.mxu0 0.0
    %869 = vmatprep.subr.mxu0 0.0
    %870 = vmatpush1.msra.mxu0 0.0
    %871 = vmatprep.subr.mxu0 0.0
    %872 = vmatpush1.msra.mxu0 0.0
    %873 = vmatprep.subr.mxu0 0.0
    %874 = vmatpush1.msra.mxu0 0.0
    %875 = vmatprep.subr.mxu0 0.0
    %876 = vmatpush1.msra.mxu0 0.0
    %877 = vmatprep.subr.mxu0 0.0
    %878 = vmatpush1.msra.mxu0 0.0
    %879 = vmatprep.subr.mxu0 0.0
    %880 = vmatpush1.msra.mxu0 0.0
    %881 = vmatprep.subr.mxu0 0.0
    %882 = vmatpush1.msra.mxu0 0.0
    %883 = vmatprep.subr.mxu0 0.0
    %884 = vmatpush1.msra.mxu0 %v57
    %885 = vmatprep.subr.mxu0 0.0
    %886 = vmatpush1.msra.mxu0 %v56
    %887 = vmatprep.subr.mxu0 0.0
    %888 = vmatpush1.msra.mxu0 %v55
    %889 = vmatprep.subr.mxu0 0.0
    %890 = vmatpush1.msra.mxu0 %v54
    %891 = vmatprep.subr.mxu0 0.0
    %892 = vmatpush2.msra.mxu0 0.0
    %893 = vmatprep.subr.mxu0 0.0
    %894 = vmatpush2.msra.mxu0 0.0
    %895 = vmatprep.subr.mxu0 0.0
    %896 = vmatpush2.msra.mxu0 0.0
    %897 = vmatprep.subr.mxu0 0.0
    %898 = vmatpush2.msra.mxu0 0.0
    %899 = vmatprep.subr.mxu0 0.0
    %900 = vmatpush2.msra.mxu0 0.0
    %901 = vmatprep.subr.mxu0 0.0
    %902 = vmatpush2.msra.mxu0 0.0
    %903 = vmatprep.subr.mxu0 0.0
    %904 = vmatpush2.msra.mxu0 0.0
    %905 = vmatprep.subr.mxu0 0.0
    %906 = vmatpush2.msra.mxu0 0.0
    %907 = vmatprep.subr.mxu0 0.0
    %908 = vmatpush2.msra.mxu0 0.0
    %909 = vmatprep.subr.mxu0 0.0
    %910 = vmatpush2.msra.mxu0 0.0
    %911 = vmatprep.subr.mxu0 0.0
    %912 = vmatpush2.msra.mxu0 0.0
    %913 = vmatprep.subr.mxu0 0.0
    %914 = vmatpush2.msra.mxu0 0.0
    %915 = vmatprep.subr.mxu0 0.0
    %916 = vmatpush2.msra.mxu0 0.0
    %917 = vmatprep.subr.mxu0 0.0
    %918 = vmatpush2.msra.mxu0 0.0
    %919 = vmatprep.subr.mxu0 0.0
    %920 = vmatpush2.msra.mxu0 0.0
    %921 = vmatprep.subr.mxu0 0.0
    %922 = vmatpush2.msra.mxu0 0.0
    %923 = vmatprep.mubr.f32.mxu0 0.0
    %924 = vmatmul.mubr.f32.gmra.mxu0 %v857
    %v925 = vpop.f32.mrf.mxu0
    %v926 = vadd.f32 0.0, %v925
    %v927 = vpop.f32.mrf.mxu0
    %928 = vdwg.mxu0
    %v929 = vadd.f32 %v142, %v926
    %v930 = vsub.f32 0.0, %v929
    %v931 = vmul.f32 %v930, 1.442695
    %v932 = vpow.pop %v931
    %v933 = vadd.f32 %v932, 1.0
    %v934 = vrcp.pop %v933
    %v935 = vmul.f32 1.0, %v934
    %v936 = vtanh.pop %v929
    %v937 = vsel %vm147, %v936, %v935
    %v938 = vmul.f32 %v937, %v847
    %940 = vrot.lane.b32.xlu0 %v937, 64
    %v941 = vpop.permute.xlu0 %940
    %v943 = vmul.f32 %v937, %v941
    %945 = vrot.lane.b32.xlu0 %v943, 32
    %v946 = vpop.permute.xlu0 %945
    %v948 = vadd.f32 %v938, %v946
    %v949 = vtanh.pop %v948
    %951 = vrot.lane.b32.xlu0 %v949, 64
    %v952 = vpop.permute.xlu0 %951
    %v954 = vmul.f32 %v937, %v952
    %v955 = vld [vmem:[%s4] sm:$0x1]
    %v957 = vlaneseq
    %v958 = vshrl.u32 %v957, 7
    %v959 = vsub.s32 0, %v958
    %v960 = vrot.slane %v955, %v959
    %961 = vrot.lane.b32.xlu0 %v960, 96
    %v962 = vpop.permute.xlu0 %961
    %v964 = vmul.f32 %v247, %v962
    %v965 = vmul.f32 %v348, %v962
    %v966 = vmul.f32 %v449, %v962
    %v967 = vmul.f32 %v550, %v962
    %v968 = vmul.f32 %v651, %v962
    %v969 = vmul.f32 %v752, %v962
    %v970 = vmul.f32 %v853, %v962
    %v971 = vmul.f32 %v954, %v962
    %980 = vrot.lane.b32.xlu0 %v964, 32
    %v981 = vpop.permute.xlu0 %980
    %982 = vrot.lane.b32.xlu0 %v965, 32
    %v983 = vpop.permute.xlu0 %982
    %984 = vrot.lane.b32.xlu0 %v966, 32
    %v985 = vpop.permute.xlu0 %984
    %986 = vrot.lane.b32.xlu0 %v967, 32
    %v987 = vpop.permute.xlu0 %986
    %988 = vrot.lane.b32.xlu0 %v968, 32
    %v989 = vpop.permute.xlu0 %988
    %990 = vrot.lane.b32.xlu0 %v969, 32
    %v991 = vpop.permute.xlu0 %990
    %992 = vrot.lane.b32.xlu0 %v970, 32
    %v993 = vpop.permute.xlu0 %992
    %994 = vrot.lane.b32.xlu0 %v971, 32
    %v995 = vpop.permute.xlu0 %994
    %v1004 = vsel %vm148, %v981, 0.0
    %1005 = vadd.xlane.f32.xlu0 %v1004
    %v1006 = vpop.xlane.xlu0 %1005
    %v1007 = vsel %vm148, %v983, 0.0
    %1008 = vadd.xlane.f32.xlu0 %v1007
    %v1009 = vpop.xlane.xlu0 %1008
    %v1010 = vsel %vm148, %v985, 0.0
    %1011 = vadd.xlane.f32.xlu0 %v1010
    %v1012 = vpop.xlane.xlu0 %1011
    %v1013 = vsel %vm148, %v987, 0.0
    %1014 = vadd.xlane.f32.xlu0 %v1013
    %v1015 = vpop.xlane.xlu0 %1014
    %v1016 = vsel %vm148, %v989, 0.0
    %1017 = vadd.xlane.f32.xlu0 %v1016
    %v1018 = vpop.xlane.xlu0 %1017
    %v1019 = vsel %vm148, %v991, 0.0
    %1020 = vadd.xlane.f32.xlu0 %v1019
    %v1021 = vpop.xlane.xlu0 %1020
    %v1022 = vsel %vm148, %v993, 0.0
    %1023 = vadd.xlane.f32.xlu0 %v1022
    %v1024 = vpop.xlane.xlu0 %1023
    %v1025 = vsel %vm148, %v995, 0.0
    %1026 = vadd.xlane.f32.xlu0 %v1025
    %v1027 = vpop.xlane.xlu0 %1026
    %v1028 = vld [vmem:[#allocation2] sm:$0x1]
    %v1030 = vlaneseq
    %v1031 = vshrl.u32 %v1030, 7
    %v1032 = vsub.s32 0, %v1031
    %v1033 = vrot.slane %v1028, %v1032
    %1034 = vset.pattern.permute.xlu0 0
    %1035 = vperm.xlu0 %1034, %v1033
    %v1036 = vpop.permute.xlu0 %1035
    %v1038 = vadd.f32 %v1006, %v1036
    %v1039 = vadd.f32 %v1009, %v1036
    %v1040 = vadd.f32 %v1012, %v1036
    %v1041 = vadd.f32 %v1015, %v1036
    %v1042 = vadd.f32 %v1018, %v1036
    %v1043 = vadd.f32 %v1021, %v1036
    %v1044 = vadd.f32 %v1024, %v1036
    %v1045 = vadd.f32 %v1027, %v1036
    %v1047 = vlaneseq
    %v1048 = vshrl.u32 %v1047, 7
    %v1049 = vsub.s32 0, %v1048
    %v1050 = vrot.slane %v52, %v1049
    %1052 = vbcast.lane.b32.xlu0 %v1050, 256
    %v1053 = vpop.permute.xlu0 %1052
    %v1054 = vlaneseq
    %v1055 = vshrl.u32 %v1054, 7
    %v1056 = vsub.s32 1, %v1055
    %v1057 = vrot.slane %v52, %v1056
    %1059 = vbcast.lane.b32.xlu0 %v1057, 256
    %v1060 = vpop.permute.xlu0 %1059
    %v1061 = vlaneseq
    %v1062 = vshrl.u32 %v1061, 7
    %v1063 = vsub.s32 2, %v1062
    %v1064 = vrot.slane %v52, %v1063
    %1066 = vbcast.lane.b32.xlu0 %v1064, 256
    %v1067 = vpop.permute.xlu0 %1066
    %v1068 = vlaneseq
    %v1069 = vshrl.u32 %v1068, 7
    %v1070 = vsub.s32 3, %v1069
    %v1071 = vrot.slane %v52, %v1070
    %1073 = vbcast.lane.b32.xlu0 %v1071, 256
    %v1074 = vpop.permute.xlu0 %1073
    %v1075 = vlaneseq
    %v1076 = vshrl.u32 %v1075, 7
    %v1077 = vsub.s32 4, %v1076
    %v1078 = vrot.slane %v52, %v1077
    %1080 = vbcast.lane.b32.xlu0 %v1078, 256
    %v1081 = vpop.permute.xlu0 %1080
    %v1082 = vlaneseq
    %v1083 = vshrl.u32 %v1082, 7
    %v1084 = vsub.s32 5, %v1083
    %v1085 = vrot.slane %v52, %v1084
    %1087 = vbcast.lane.b32.xlu0 %v1085, 256
    %v1088 = vpop.permute.xlu0 %1087
    %v1089 = vlaneseq
    %v1090 = vshrl.u32 %v1089, 7
    %v1091 = vsub.s32 6, %v1090
    %v1092 = vrot.slane %v52, %v1091
    %1094 = vbcast.lane.b32.xlu0 %v1092, 256
    %v1095 = vpop.permute.xlu0 %1094
    %v1096 = vlaneseq
    %v1097 = vshrl.u32 %v1096, 7
    %v1098 = vsub.s32 7, %v1097
    %v1099 = vrot.slane %v52, %v1098
    %1101 = vbcast.lane.b32.xlu0 %v1099, 256
    %v1102 = vpop.permute.xlu0 %1101
    %v1111 = vadd.f32 %v1038, %v1053
    %v1112 = vadd.f32 %v1039, %v1060
    %v1113 = vadd.f32 %v1040, %v1067
    %v1114 = vadd.f32 %v1041, %v1074
    %v1115 = vadd.f32 %v1042, %v1081
    %v1116 = vadd.f32 %v1043, %v1088
    %v1117 = vadd.f32 %v1044, %v1095
    %v1118 = vadd.f32 %v1045, %v1102
    %1127 = vset.pattern.permute.xlu0 0
    %1128 = vperm.xlu0 %1127, %v1111
    %v1129 = vpop.permute.xlu0 %1128
    %1130 = vset.pattern.permute.xlu0 0
    %1131 = vperm.xlu0 %1130, %v1112
    %v1132 = vpop.permute.xlu0 %1131
    %1133 = vset.pattern.permute.xlu0 0
    %1134 = vperm.xlu0 %1133, %v1113
    %v1135 = vpop.permute.xlu0 %1134
    %1136 = vset.pattern.permute.xlu0 0
    %1137 = vperm.xlu0 %1136, %v1114
    %v1138 = vpop.permute.xlu0 %1137
    %1139 = vset.pattern.permute.xlu0 0
    %1140 = vperm.xlu0 %1139, %v1115
    %v1141 = vpop.permute.xlu0 %1140
    %1142 = vset.pattern.permute.xlu0 0
    %1143 = vperm.xlu0 %1142, %v1116
    %v1144 = vpop.permute.xlu0 %1143
    %1145 = vset.pattern.permute.xlu0 0
    %1146 = vperm.xlu0 %1145, %v1117
    %v1147 = vpop.permute.xlu0 %1146
    %1148 = vset.pattern.permute.xlu0 0
    %1149 = vperm.xlu0 %1148, %v1118
    %v1150 = vpop.permute.xlu0 %1149
    %v1151 = vlaneseq
    %v1152 = vshrl.u32 %v1151, 7
    %v1153 = vsub.s32 %v144, %v1152
    %v1154 = vrot.slane %v1129, %v1153
    %v1155 = vlaneseq
    %v1156 = vshrl.u32 %v1155, 7
    %v1157 = vsub.s32 %v144, %v1156
    %v1158 = vrot.slane %v1132, %v1157
    %v1159 = vlaneseq
    %v1160 = vshrl.u32 %v1159, 7
    %v1161 = vsub.s32 %v144, %v1160
    %v1162 = vrot.slane %v1135, %v1161
    %v1163 = vlaneseq
    %v1164 = vshrl.u32 %v1163, 7
    %v1165 = vsub.s32 %v144, %v1164
    %v1166 = vrot.slane %v1138, %v1165
    %v1167 = vlaneseq
    %v1168 = vshrl.u32 %v1167, 7
    %v1169 = vsub.s32 %v144, %v1168
    %v1170 = vrot.slane %v1141, %v1169
    %v1171 = vlaneseq
    %v1172 = vshrl.u32 %v1171, 7
    %v1173 = vsub.s32 %v144, %v1172
    %v1174 = vrot.slane %v1144, %v1173
    %v1175 = vlaneseq
    %v1176 = vshrl.u32 %v1175, 7
    %v1177 = vsub.s32 %v144, %v1176
    %v1178 = vrot.slane %v1147, %v1177
    %v1179 = vlaneseq
    %v1180 = vshrl.u32 %v1179, 7
    %v1181 = vsub.s32 %v144, %v1180
    %v1182 = vrot.slane %v1150, %v1181
    %vm1183 = vcmask 1041409
    %v1184 = vsel %vm1183, %v1158, %v1154
    %vm1185 = vcmask 1042434
    %v1186 = vsel %vm1185, %v1162, %v1184
    %vm1187 = vcmask 1043459
    %v1188 = vsel %vm1187, %v1166, %v1186
    %vm1189 = vcmask 1044484
    %v1190 = vsel %vm1189, %v1170, %v1188
    %vm1191 = vcmask 1045509
    %v1192 = vsel %vm1191, %v1174, %v1190
    %vm1193 = vcmask 1046534
    %v1194 = vsel %vm1193, %v1178, %v1192
    %vm1195 = vcmask 1047559
    %v1196 = vsel %vm1195, %v1182, %v1194
    %vm1198 = vcmask 64512
    %1199 = vst.msk [vmem:[#allocation8] sm:$0xff] %vm1198, %v1196
    // Predicated region
    $region34: #{tpu_custom_call.1} parent=1 // pred_check
      _
    $region35: #{tpu_custom_call.1} parent=1 // pred_check_branch
      %1201 = sbr.rel (0) target = $region37
    $region36: #{tpu_custom_call.1} parent=1 // pred_region
      %s1203 = ssub.s32 128, 128
      %1204 = vsyncadd [#allocation5], %s1203
      %s1206 = sshll.u32 [#allocation8], 4
      %s1207 = int_to_ptr.vmem [resolvable:$true] %s1206
      %1209 = dma.vmem_to_hbm [thread:$0]  %s1207, 128, %s6, [#allocation5]
    $region37: #{tpu_custom_call.1} parent=1 // pred_fallthru
      _
    // Predicated region
    $region38: #{tpu_custom_call.1} parent=1 // pred_check
      _
    $region39: #{tpu_custom_call.1} parent=1 // pred_check_branch
      %1211 = sbr.rel (0) target = $region41
    $region40: #{tpu_custom_call.1} parent=1 // pred_region
      %1212 = dma.done [#allocation5], 128
    $region41: #{tpu_custom_call.1} parent=1 // pred_fallthru
      _
    %1213 = vsyncpa [#allocation4], 1
    %1214 = vsyncpa [#allocation7], 1
    %1215 = vsyncpa [#allocation5], 1

</llo_original>
